<compile_context>
chip_gen: v7x
topology: tpu7x:2x2x1
jax: 0.10.0
libtpu: 0.0.40
codegen_flags: <defaults>
</compile_context>

<pallas_src>
import functools
import numpy as np
import jax
import jax.numpy as jnp
from jax.experimental import pallas as pl
from jax.experimental.pallas import tpu as pltpu

BN_EPS = 1e-5
LEAKY_SLOPE = 0.1
# Weights up to this many bf16 bytes are kept VMEM-resident for the whole grid.
W_RESIDENT_MAX_BYTES = 8 * 1024 * 1024


def _round_up(x, m):
    return (x + m - 1) // m * m


def _vmem_limit(nbytes):
    # Scoped-VMEM limit from actual tile bytes (+ headroom), kept under v7x's 64 MiB.
    return int(min(max(nbytes + (4 << 20), 16 << 20), 56 << 20))


# ----------------------------- Pallas kernels -----------------------------

def _make_matmul_stats_kernel(tk, w_resident):
    """Tiled matmul (bf16 operands, f32 VMEM accumulator) accumulated over the K grid
    axis. The last K step stores the bf16 pre-BN tile and per-M-tile BN partial
    sums / sums-of-squares.  No bias is added: under train-mode BatchNorm the conv
    bias cancels exactly, and leaving it out keeps zero-padded M rows exactly zero,
    so no row masking is needed in the statistics epilogue."""
    def kernel(a_ref, w_ref, y_ref, psum_ref, psumsq_ref, acc_ref):
        # program_id/num_programs evaluated here (outside pl.when bodies) so only
        # plain scalars flow into the cond branches.
        k = pl.program_id(1)
        nk = pl.num_programs(1)

        @pl.when(k == 0)
        def _():
            acc_ref[...] = jnp.zeros_like(acc_ref)

        if w_resident:
            w = w_ref[pl.ds(k * tk, tk), :]      # slice the VMEM-resident weights
        else:
            w = w_ref[...]
        acc_ref[...] += jnp.dot(a_ref[...], w, preferred_element_type=jnp.float32)

        @pl.when(k == nk - 1)
        def _():
            y = acc_ref[...]
            y_ref[...] = y.astype(y_ref.dtype)           # bf16 pre-BN intermediate
            psum_ref[...] = jnp.sum(y, axis=0, keepdims=True)[None]
            psumsq_ref[...] = jnp.sum(y * y, axis=0, keepdims=True)[None]
    return kernel


def _make_bn_act_kernel(act):
    """Fused BatchNorm affine (precomputed scale/shift) + LeakyReLU(0.1)/Identity."""
    def kernel(y_ref, scale_ref, shift_ref, o_ref):
        z = y_ref[...].astype(jnp.float32) * scale_ref[...] + shift_ref[...]
        if act:
            z = jnp.where(z > 0, z, LEAKY_SLOPE * z)
        o_ref[...] = z
    return kernel


# ------------------------------ JAX-side glue ------------------------------

def _im2col(x, k, s, p, d):
    """x is already bf16 (cast before padding/stacking to halve intermediate traffic)."""
    N, H, W, C = x.shape
    xp = jnp.pad(x, ((0, 0), (p, p), (p, p), (0, 0)))
    Ho = (H + 2 * p - d * (k - 1) - 1) // s + 1
    Wo = (W + 2 * p - d * (k - 1) - 1) // s + 1
    cols = []
    for di in range(k):
        for dj in range(k):
            hi, wj = di * d, dj * d
            cols.append(xp[:, hi:hi + (Ho - 1) * s + 1:s,
                           wj:wj + (Wo - 1) * s + 1:s, :])
    patches = jnp.stack(cols, axis=3)            # (N, Ho, Wo, k*k, C)
    return patches.reshape(N * Ho * Wo, k * k * C), Ho, Wo


def _conv_group_matmul(patches, w, *, tm=512, tk=512):
    """patches (M,K) bf16, w (K,Cout) f32 -> pre-BN output (M_pad, Cout_pad) bf16
    plus per-M-tile BN partial statistics (f32)."""
    M, K = patches.shape
    cout = w.shape[1]

    cout_pad = _round_up(cout, 128)
    tk_eff = min(tk, _round_up(K, 128))
    k_pad = _round_up(K, tk_eff)

    tm_eff = min(tm, _round_up(M, 8))
    if M > 8:
        # Keep >= 2 steps on the "parallel" M axis so both v7x TensorCores get work.
        tm_eff = min(tm_eff, _round_up(pl.cdiv(M, 2), 8))
    m_pad = _round_up(M, tm_eff)
    grid_m = m_pad // tm_eff
    grid_k = k_pad // tk_eff

    a = jnp.pad(patches, ((0, m_pad - M), (0, k_pad - K)))              # bf16 already
    wp = jnp.pad(w.astype(jnp.bfloat16), ((0, k_pad - K), (0, cout_pad - cout)))

    w_resident = k_pad * cout_pad * 2 <= W_RESIDENT_MAX_BYTES
    if w_resident:
        # One weight block, constant index across the grid -> fetched into VMEM once.
        w_spec = pl.BlockSpec((k_pad, cout_pad), lambda i, k: (0, 0))
        w_block_bytes = k_pad * cout_pad * 2
    else:
        w_spec = pl.BlockSpec((tk_eff, cout_pad), lambda i, k: (k, 0))
        w_block_bytes = tk_eff * cout_pad * 2

    vmem_bytes = (2 * tm_eff * tk_eff * 2        # A stream, double-buffered bf16
                  + 2 * w_block_bytes            # weights (double-buffered)
                  + 2 * tm_eff * cout_pad * 2    # bf16 pre-BN output
                  + 4 * 2 * cout_pad * 4         # psum / psumsq blocks
                  + tm_eff * cout_pad * 4)       # f32 accumulator scratch

    y, psum, psumsq = pl.pallas_call(
        _make_matmul_stats_kernel(tk_eff, w_resident),
        out_shape=(
            jax.ShapeDtypeStruct((m_pad, cout_pad), jnp.bfloat16),
            jax.ShapeDtypeStruct((grid_m, 1, cout_pad), jnp.float32),
            jax.ShapeDtypeStruct((grid_m, 1, cout_pad), jnp.float32),
        ),
        grid_spec=pltpu.PrefetchScalarGridSpec(
            num_scalar_prefetch=0,
            grid=(grid_m, grid_k),
            in_specs=[
                pl.BlockSpec((tm_eff, tk_eff), lambda i, k: (i, k)),
                w_spec,
            ],
            out_specs=[
                pl.BlockSpec((tm_eff, cout_pad), lambda i, k: (i, 0)),
                pl.BlockSpec((1, 1, cout_pad), lambda i, k: (i, 0, 0)),
                pl.BlockSpec((1, 1, cout_pad), lambda i, k: (i, 0, 0)),
            ],
            scratch_shapes=[pltpu.VMEM((tm_eff, cout_pad), jnp.float32)],
        ),
        compiler_params=pltpu.CompilerParams(
            dimension_semantics=("parallel", "arbitrary"),
            vmem_limit_bytes=_vmem_limit(vmem_bytes)),
    )(a, wp)
    return y, psum, psumsq, (m_pad, cout_pad, tm_eff, grid_m)


def _bn_act(y, scale, shift, *, tm_eff, grid_m, act):
    m_pad, cout_pad = y.shape
    vmem_bytes = (2 * tm_eff * cout_pad * 2      # bf16 input
                  + 2 * tm_eff * cout_pad * 4    # f32 output
                  + 4 * cout_pad * 4)            # scale/shift
    return pl.pallas_call(
        _make_bn_act_kernel(act),
        out_shape=jax.ShapeDtypeStruct((m_pad, cout_pad), jnp.float32),
        grid_spec=pltpu.PrefetchScalarGridSpec(
            num_scalar_prefetch=0,
            grid=(grid_m,),
            in_specs=[
                pl.BlockSpec((tm_eff, cout_pad), lambda i: (i, 0)),
                pl.BlockSpec((1, cout_pad), lambda i: (0, 0)),
                pl.BlockSpec((1, cout_pad), lambda i: (0, 0)),
            ],
            out_specs=pl.BlockSpec((tm_eff, cout_pad), lambda i: (i, 0)),
        ),
        compiler_params=pltpu.CompilerParams(
            dimension_semantics=("parallel",),
            vmem_limit_bytes=_vmem_limit(vmem_bytes)),
    )(y, scale, shift)


def conv_forward(params, x_nchw, *, k, s=1, p=0, d=1, g=1, act=True,
                 tm=512, tk=512):
    """Forward of Conv = Conv2d(c1,c2,k,s,p,d,g) + BatchNorm2d (train-mode batch
    statistics) + LeakyReLU(0.1) (or Identity).  NCHW in, NCHW out.
    The conv bias cancels exactly under train-mode BatchNorm, so it is never applied
    (output is bit-for-bit the same as adding it and normalizing)."""
    # TODO(synk): keep the model NHWC end-to-end to drop the per-layer transposes.
    x = jnp.transpose(x_nchw, (0, 2, 3, 1)).astype(jnp.bfloat16)   # NCHW->NHWC, bf16 first
    N, H, W, c1 = x.shape
    c2 = params["gamma"].shape[0]
    cin_g, cout_g = c1 // g, c2 // g

    # TODO(synk): fold groups into the kernel grid instead of a Python loop of launches.
    group_outs = []
    Ho = Wo = None
    for gi in range(g):
        xg = x[..., gi * cin_g:(gi + 1) * cin_g]
        patches, Ho, Wo = _im2col(xg, k, s, p, d)
        M = patches.shape[0]

        gamma_g = params["gamma"][gi * cout_g:(gi + 1) * cout_g]
        beta_g = params["beta"][gi * cout_g:(gi + 1) * cout_g]

        y, psum, psumsq, (m_pad, cout_pad, tm_eff, grid_m) = _conv_group_matmul(
            patches, params["w"][gi], tm=tm, tk=tk)

        # Global per-channel train-mode BN stats from the tiny per-tile partials.
        ssum = jnp.sum(psum, axis=0)             # (1, cout_pad)
        ssq = jnp.sum(psumsq, axis=0)            # (1, cout_pad)
        mean = ssum / M
        var = jnp.maximum(ssq / M - mean * mean, 0.0)
        gamma_p = jnp.pad(gamma_g, (0, cout_pad - cout_g)).reshape(1, cout_pad)
        beta_p = jnp.pad(beta_g, (0, cout_pad - cout_g)).reshape(1, cout_pad)
        scale = gamma_p * jax.lax.rsqrt(var + BN_EPS)
        shift = beta_p - mean * scale

        out = _bn_act(y, scale, shift, tm_eff=tm_eff, grid_m=grid_m, act=act)
        group_outs.append(out[:M, :cout_g])      # drop padded rows / lanes

    out = jnp.concatenate(group_outs, axis=-1) if g > 1 else group_outs[0]
    out = out.reshape(N, Ho, Wo, c2)
    return jnp.transpose(out, (0, 3, 1, 2))      # NHWC -> NCHW


# ------------------------------ parameter init ------------------------------

def init_conv_params(key, c1, c2, k, g=1):
    """Weight layout per group: (k*k*cin_g, cout_g) with K ordered (kh, kw) outer,
    cin inner.  To port PyTorch Conv2d weights (Cout, Cin, kh, kw), transpose to
    (kh, kw, Cin, Cout) before flattening.  `b` is kept for interface parity with
    nn.Conv2d(bias=True) but is unused: it cancels under train-mode BatchNorm."""
    cin_g, cout_g = c1 // g, c2 // g
    kw, kb = jax.random.split(key)
    fan = k * k * cin_g
    w = jax.random.normal(kw, (g, fan, cout_g), jnp.float32) / np.sqrt(fan)
    b = 0.01 * jax.random.normal(kb, (c2,), jnp.float32)
    return dict(w=w, b=b,
                gamma=jnp.ones((c2,), jnp.float32),
                beta=jnp.zeros((c2,), jnp.float32))


# ---------------------------------- main ----------------------------------

if __name__ == "__main__":
    B, C1, C2, S = 2, 4, 8, 16
    K, STRIDE, PAD = 3, 1, 1

    root = jax.random.PRNGKey(0)
    kp, kx = jax.random.split(root)
    params = init_conv_params(kp, C1, C2, K, g=1)
    x = jax.random.normal(kx, (B, C1, S, S), jnp.float32)

    fwd = jax.jit(functools.partial(conv_forward, k=K, s=STRIDE, p=PAD,
                                    d=1, g=1, act=True))
    out = fwd(params, x)
    jax.block_until_ready(out)
    assert out.shape == (B, C2, S, S)
    print("KERNEL_OK")
</pallas_src>

<mosaic_0001>
module attributes {stable_mosaic.version = 11 : i64} {
  func.func @kernel(%arg0: i32, %arg1: i32, %arg2: memref<256x128xbf16, #tpu.memory_space<vmem>>, %arg3: memref<128x128xbf16, #tpu.memory_space<vmem>>, %arg4: memref<256x128xbf16, #tpu.memory_space<vmem>>, %arg5: memref<1x1x128xf32, #tpu.memory_space<vmem>>, %arg6: memref<1x1x128xf32, #tpu.memory_space<vmem>>, %arg7: memref<256x128xf32, #tpu.memory_space<vmem>>) attributes {dimension_semantics = [#tpu.dimension_semantics<parallel>, #tpu.dimension_semantics<arbitrary>], iteration_bounds = array<i64: 2, 1>, scalar_prefetch = 0 : i64, scratch_operands = 1 : i64, tpu.core_type = #tpu.core_type<tc>, window_params = [{transform_indices = @transform_0, window_bounds = array<i64: 256, 128>}, {pipeline_mode = #tpu.pipeline_mode<synchronous>, transform_indices = @transform_1, window_bounds = array<i64: 128, 128>}, {transform_indices = @transform_2, window_bounds = array<i64: 256, 128>}, {transform_indices = @transform_3, window_bounds = array<i64: 1, 1, 128>}, {transform_indices = @transform_4, window_bounds = array<i64: 1, 1, 128>}]} {
    %c0_i32 = arith.constant 0 : i32
    %0 = arith.cmpi eq, %arg1, %c0_i32 : i32
    %1 = arith.extui %0 : i1 to i32
    %c0_i32_0 = arith.constant 0 : i32
    %2 = arith.cmpi ne, %1, %c0_i32_0 : i32
    scf.if %2 {
      %cst_9 = arith.constant 0.000000e+00 : f32
      %14 = vector.broadcast %cst_9 : f32 to vector<256x128xf32>
      %c0_10 = arith.constant 0 : index
      %c0_11 = arith.constant 0 : index
      %15 = vector.load %arg7[%c0_10, %c0_11] : memref<256x128xf32, #tpu.memory_space<vmem>>, vector<256x128xf32>
      tpu.vector_store %arg7[%c0_10, %c0_11], %14 {strides = array<i32>} : memref<256x128xf32, #tpu.memory_space<vmem>>, vector<256x128xf32>,
    } else {
    }
    %c128_i32 = arith.constant 128 : i32
    %3 = arith.muli %arg1, %c128_i32 : i32
    %4 = arith.index_cast %3 : i32 to index
    %c0 = arith.constant 0 : index
    %5 = vector.load %arg3[%4, %c0] : memref<128x128xbf16, #tpu.memory_space<vmem>>, vector<128x128xbf16>
    %c0_1 = arith.constant 0 : index
    %c0_2 = arith.constant 0 : index
    %6 = vector.load %arg7[%c0_1, %c0_2] : memref<256x128xf32, #tpu.memory_space<vmem>>, vector<256x128xf32>
    %c0_3 = arith.constant 0 : index
    %c0_4 = arith.constant 0 : index
    %7 = vector.load %arg2[%c0_3, %c0_4] : memref<256x128xbf16, #tpu.memory_space<vmem>>, vector<256x128xbf16>
    %cst = arith.constant dense<0.000000e+00> : vector<256x128xf32>
    %8 = tpu.matmul %7, %5, %cst {dimension_numbers = #tpu.dot_dimension_numbers<[1], [0], [0], [1], [0, 0, 1, 1], [], []>} : vector<256x128xbf16>, vector<128x128xbf16>, vector<256x128xf32> -> vector<256x128xf32>
    %9 = arith.addf %6, %8 : vector<256x128xf32>
    %c0_5 = arith.constant 0 : index
    %c0_6 = arith.constant 0 : index
    %10 = vector.load %arg7[%c0_5, %c0_6] : memref<256x128xf32, #tpu.memory_space<vmem>>, vector<256x128xf32>
    tpu.vector_store %arg7[%c0_5, %c0_6], %9 {strides = array<i32>} : memref<256x128xf32, #tpu.memory_space<vmem>>, vector<256x128xf32>,
    %c0_i32_7 = arith.constant 0 : i32
    %11 = arith.cmpi eq, %arg1, %c0_i32_7 : i32
    %12 = arith.extui %11 : i1 to i32
    %c0_i32_8 = arith.constant 0 : i32
    %13 = arith.cmpi ne, %12, %c0_i32_8 : i32
    scf.if %13 {
      %c0_9 = arith.constant 0 : index
      %c0_10 = arith.constant 0 : index
      %14 = vector.load %arg7[%c0_9, %c0_10] : memref<256x128xf32, #tpu.memory_space<vmem>>, vector<256x128xf32>
      %15 = arith.truncf %14 : vector<256x128xf32> to vector<256x128xbf16>
      %c0_11 = arith.constant 0 : index
      %c0_12 = arith.constant 0 : index
      %16 = vector.load %arg4[%c0_11, %c0_12] : memref<256x128xbf16, #tpu.memory_space<vmem>>, vector<256x128xbf16>
      tpu.vector_store %arg4[%c0_11, %c0_12], %15 {strides = array<i32>} : memref<256x128xbf16, #tpu.memory_space<vmem>>, vector<256x128xbf16>,
      %cst_13 = arith.constant dense<0.000000e+00> : vector<128xf32>
      %17 = vector.multi_reduction <add>, %14, %cst_13 [0] : vector<256x128xf32> to vector<128xf32>
      %18 = vector.shape_cast %17 : vector<128xf32> to vector<1x128xf32>
      %19 = vector.shape_cast %18 : vector<1x128xf32> to vector<1x1x128xf32>
      %c0_14 = arith.constant 0 : index
      %c0_15 = arith.constant 0 : index
      %c0_16 = arith.constant 0 : index
      %20 = vector.load %arg5[%c0_14, %c0_15, %c0_16] : memref<1x1x128xf32, #tpu.memory_space<vmem>>, vector<1x1x128xf32>
      tpu.vector_store %arg5[%c0_14, %c0_15, %c0_16], %19 {strides = array<i32>} : memref<1x1x128xf32, #tpu.memory_space<vmem>>, vector<1x1x128xf32>,
      %21 = arith.mulf %14, %14 : vector<256x128xf32>
      %cst_17 = arith.constant dense<0.000000e+00> : vector<128xf32>
      %22 = vector.multi_reduction <add>, %21, %cst_17 [0] : vector<256x128xf32> to vector<128xf32>
      %23 = vector.shape_cast %22 : vector<128xf32> to vector<1x128xf32>
      %24 = vector.shape_cast %23 : vector<1x128xf32> to vector<1x1x128xf32>
      %c0_18 = arith.constant 0 : index
      %c0_19 = arith.constant 0 : index
      %c0_20 = arith.constant 0 : index
      %25 = vector.load %arg6[%c0_18, %c0_19, %c0_20] : memref<1x1x128xf32, #tpu.memory_space<vmem>>, vector<1x1x128xf32>
      tpu.vector_store %arg6[%c0_18, %c0_19, %c0_20], %24 {strides = array<i32>} : memref<1x1x128xf32, #tpu.memory_space<vmem>>, vector<1x1x128xf32>,
    } else {
    }
    return
  }
  func.func @transform_0(%arg0: i32, %arg1: i32) -> (i32, i32) {
    %c0_i32 = arith.constant 0 : i32
    return %arg0, %arg1 : i32, i32
  }
  func.func @transform_1(%arg0: i32, %arg1: i32) -> (i32, i32) {
    %c0_i32 = arith.constant 0 : i32
    %c0_i32_0 = arith.constant 0 : i32
    %c0_i32_1 = arith.constant 0 : i32
    return %c0_i32, %c0_i32_0 : i32, i32
  }
  func.func @transform_2(%arg0: i32, %arg1: i32) -> (i32, i32) {
    %c0_i32 = arith.constant 0 : i32
    %c0_i32_0 = arith.constant 0 : i32
    return %arg0, %c0_i32 : i32, i32
  }
  func.func @transform_3(%arg0: i32, %arg1: i32) -> (i32, i32, i32) {
    %c0_i32 = arith.constant 0 : i32
    %c0_i32_0 = arith.constant 0 : i32
    %c0_i32_1 = arith.constant 0 : i32
    return %arg0, %c0_i32, %c0_i32_0 : i32, i32, i32
  }
  func.func @transform_4(%arg0: i32, %arg1: i32) -> (i32, i32, i32) {
    %c0_i32 = arith.constant 0 : i32
    %c0_i32_0 = arith.constant 0 : i32
    %c0_i32_1 = arith.constant 0 : i32
    return %arg0, %c0_i32, %c0_i32_0 : i32, i32, i32
  }
}

module attributes {stable_mosaic.version = 11 : i64} {
  func.func @kernel(%arg0: i32, %arg1: memref<256x128xbf16, #tpu.memory_space<vmem>>, %arg2: memref<1x128xf32, #tpu.memory_space<vmem>>, %arg3: memref<1x128xf32, #tpu.memory_space<vmem>>, %arg4: memref<256x128xf32, #tpu.memory_space<vmem>>) attributes {dimension_semantics = [#tpu.dimension_semantics<parallel>], iteration_bounds = array<i64: 2>, scalar_prefetch = 0 : i64, scratch_operands = 0 : i64, tpu.core_type = #tpu.core_type<tc>, window_params = [{transform_indices = @transform_0, window_bounds = array<i64: 256, 128>}, {pipeline_mode = #tpu.pipeline_mode<synchronous>, transform_indices = @transform_1, window_bounds = array<i64: 1, 128>}, {pipeline_mode = #tpu.pipeline_mode<synchronous>, transform_indices = @transform_2, window_bounds = array<i64: 1, 128>}, {transform_indices = @transform_3, window_bounds = array<i64: 256, 128>}]} {
    %c0 = arith.constant 0 : index
    %c0_0 = arith.constant 0 : index
    %0 = vector.load %arg1[%c0, %c0_0] : memref<256x128xbf16, #tpu.memory_space<vmem>>, vector<256x128xbf16>
    %1 = arith.extf %0 : vector<256x128xbf16> to vector<256x128xf32>
    %c0_1 = arith.constant 0 : index
    %c0_2 = arith.constant 0 : index
    %2 = vector.load %arg2[%c0_1, %c0_2] : memref<1x128xf32, #tpu.memory_space<vmem>>, vector<1x128xf32>
    %3 = vector.broadcast %2 : vector<1x128xf32> to vector<256x128xf32>
    %4 = arith.mulf %1, %3 : vector<256x128xf32>
    %c0_3 = arith.constant 0 : index
    %c0_4 = arith.constant 0 : index
    %5 = vector.load %arg3[%c0_3, %c0_4] : memref<1x128xf32, #tpu.memory_space<vmem>>, vector<1x128xf32>
    %6 = vector.broadcast %5 : vector<1x128xf32> to vector<256x128xf32>
    %7 = arith.addf %4, %6 : vector<256x128xf32>
    %cst = arith.constant 0.000000e+00 : f32
    %8 = vector.broadcast %cst : f32 to vector<256x128xf32>
    %9 = arith.cmpf ogt, %7, %8 : vector<256x128xf32>
    %cst_5 = arith.constant 1.000000e-01 : f32
    %10 = vector.broadcast %cst_5 : f32 to vector<256x128xf32>
    %11 = arith.mulf %10, %7 : vector<256x128xf32>
    %12 = arith.select %9, %7, %11 : vector<256x128xi1>, vector<256x128xf32>
    %c0_6 = arith.constant 0 : index
    %c0_7 = arith.constant 0 : index
    %13 = vector.load %arg4[%c0_6, %c0_7] : memref<256x128xf32, #tpu.memory_space<vmem>>, vector<256x128xf32>
    tpu.vector_store %arg4[%c0_6, %c0_7], %12 {strides = array<i32>} : memref<256x128xf32, #tpu.memory_space<vmem>>, vector<256x128xf32>,
    return
  }
  func.func @transform_0(%arg0: i32) -> (i32, i32) {
    %c0_i32 = arith.constant 0 : i32
    %c0_i32_0 = arith.constant 0 : i32
    return %arg0, %c0_i32 : i32, i32
  }
  func.func @transform_1(%arg0: i32) -> (i32, i32) {
    %c0_i32 = arith.constant 0 : i32
    %c0_i32_0 = arith.constant 0 : i32
    %c0_i32_1 = arith.constant 0 : i32
    return %c0_i32, %c0_i32_0 : i32, i32
  }
  func.func @transform_2(%arg0: i32) -> (i32, i32) {
    %c0_i32 = arith.constant 0 : i32
    %c0_i32_0 = arith.constant 0 : i32
    %c0_i32_1 = arith.constant 0 : i32
    return %c0_i32, %c0_i32_0 : i32, i32
  }
  func.func @transform_3(%arg0: i32) -> (i32, i32) {
    %c0_i32 = arith.constant 0 : i32
    %c0_i32_0 = arith.constant 0 : i32
    return %arg0, %c0_i32 : i32, i32
  }
}

</mosaic_0001>

<llo_original>
// kernel: conv_forward.3
$region0: #{conv_forward.3}
  #allocation0 [shape = 'u32[]', space=smem, size = 0x4, offset = 0x4, fixed_abs, tag = 'smem constant byte address 0x4 - core index']
  #allocation1 [shape = 'u32[144,128]{1,0:T(1,128)}', space=vmem, size = 0x12000, scoped, tag = 'internal scratch']
  %s0 = inlined_call_operand.vmem [shape: bf16[512,128], index: 0, kind: input, shape index: {}]
  %s1 = inlined_call_operand.vmem [shape: f32[1,128], index: 1, kind: input, shape index: {}]
  %s2 = inlined_call_operand.vmem [shape: f32[1,128], index: 2, kind: input, shape index: {}]
  %s3 = inlined_call_operand.vmem [shape: f32[512,128], index: 3, kind: output, shape index: {}]
  %s4 = sld [smem:[#allocation0]]
  $region45: #{conv_forward.3} parent=0
    _
  %s6 = ssub.s32 1, %s4
  %s7 = scalar_select 0, %s6, %s4
  loop: start=0, step=1, limit=4
  $region2: #{conv_forward.3} parent=0 // loop_pre_header
    _
  $region3: #{conv_forward.3} parent=0 // loop_header
    %s9 = sphi 0, %s13
    %p10 = scmp.ge.s32.totalorder %s9, 4
    %s19 = sphi 0, %s21
    %s22 = sphi 0, %s19
    %s23 = sphi 0, %s22
    %s39 = sphi 0, %s23
    %s43 = sphi 0, %s43
    %s45 = sphi 0, %s43
    %s46 = sphi 0, %s45
    %s60 = sphi 0, %s46
    %s64 = sphi 0, %s64
    %s66 = sphi 0, %s64
    %s67 = sphi 0, %s66
    %s81 = sphi 0, %s67
    %s87 = sphi 0, %s89
    %s90 = sphi 0, %s87
    %s91 = sphi 0, %s90
    %s107 = sphi 0, %s91
  $region4: #{conv_forward.3} parent=0 // loop_header_branch
    %12 = sbr.rel (%p10) target = $region8
  $region5: #{conv_forward.3} parent=0 // loop_body
    %s14 = ssub.s32 %s9, 1
    %s15 = ssub.s32 %s9, 2
    %s16 = sadd.s32 %s9, 1
    %s17 = ssub.s32 %s9, %s16
    %p18 = scmp.eq.s32.totalorder %s17, 0
    %s20 = sadd.s32 %s19, 1
    %s21 = scalar_select %p18, %s19, %s20
    %p24 = pneg %p18
    %p25 = scmp.eq.s32.totalorder %s9, 1
    %p26 = por %p24, %p25
    %p27 = scmp.ne.s32.totalorder %s19, %s22
    %p28 = scmp.eq.s32.totalorder %s9, 0
    %p29 = por %p27, %p28
    %p30 = scmp.ne.s32.totalorder %s19, %s22
    %p31 = scmp.eq.s32.totalorder %s14, 1
    %p32 = por %p30, %p31
    %p33 = scmp.ne.s32.totalorder %s22, %s23
    %p34 = scmp.eq.s32.totalorder %s14, 0
    %p35 = por %p33, %p34
    %p36 = scmp.ne.s32.totalorder %s22, %s23
    %p37 = scmp.eq.s32.totalorder %s15, 1
    %p38 = por %p36, %p37
    %p40 = scmp.ne.s32.totalorder %s23, %s39
    %p41 = scmp.eq.s32.totalorder %s15, 0
    %p42 = por %p40, %p41
    %s44 = sadd.s32 %s43, 1
    %p47 = scmp.eq.s32.totalorder %s9, 1
    %p48 = scmp.ne.s32.totalorder %s43, %s45
    %p49 = scmp.eq.s32.totalorder %s9, 0
    %p50 = por %p48, %p49
    %p51 = scmp.ne.s32.totalorder %s43, %s45
    %p52 = scmp.eq.s32.totalorder %s14, 1
    %p53 = por %p51, %p52
    %p54 = scmp.ne.s32.totalorder %s45, %s46
    %p55 = scmp.eq.s32.totalorder %s14, 0
    %p56 = por %p54, %p55
    %p57 = scmp.ne.s32.totalorder %s45, %s46
    %p58 = scmp.eq.s32.totalorder %s15, 1
    %p59 = por %p57, %p58
    %p61 = scmp.ne.s32.totalorder %s46, %s60
    %p62 = scmp.eq.s32.totalorder %s15, 0
    %p63 = por %p61, %p62
    %s65 = sadd.s32 %s64, 1
    %p68 = scmp.eq.s32.totalorder %s9, 1
    %p69 = scmp.ne.s32.totalorder %s64, %s66
    %p70 = scmp.eq.s32.totalorder %s9, 0
    %p71 = por %p69, %p70
    %p72 = scmp.ne.s32.totalorder %s64, %s66
    %p73 = scmp.eq.s32.totalorder %s14, 1
    %p74 = por %p72, %p73
    %p75 = scmp.ne.s32.totalorder %s66, %s67
    %p76 = scmp.eq.s32.totalorder %s14, 0
    %p77 = por %p75, %p76
    %p78 = scmp.ne.s32.totalorder %s66, %s67
    %p79 = scmp.eq.s32.totalorder %s15, 1
    %p80 = por %p78, %p79
    %p82 = scmp.ne.s32.totalorder %s67, %s81
    %p83 = scmp.eq.s32.totalorder %s15, 0
    %p84 = por %p82, %p83
    %s85 = ssub.s32 %s9, %s16
    %p86 = scmp.eq.s32.totalorder %s85, 0
    %s88 = sadd.s32 %s87, 1
    %s89 = scalar_select %p86, %s87, %s88
    %p92 = pneg %p86
    %p93 = scmp.eq.s32.totalorder %s9, 1
    %p94 = por %p92, %p93
    %p95 = scmp.ne.s32.totalorder %s87, %s90
    %p96 = scmp.eq.s32.totalorder %s9, 0
    %p97 = por %p95, %p96
    %p98 = scmp.ne.s32.totalorder %s87, %s90
    %p99 = scmp.eq.s32.totalorder %s14, 1
    %p100 = por %p98, %p99
    %p101 = scmp.ne.s32.totalorder %s90, %s91
    %p102 = scmp.eq.s32.totalorder %s14, 0
    %p103 = por %p101, %p102
    %p104 = scmp.ne.s32.totalorder %s90, %s91
    %p105 = scmp.eq.s32.totalorder %s15, 1
    %p106 = por %p104, %p105
    %p108 = scmp.ne.s32.totalorder %s91, %s107
    %p109 = scmp.eq.s32.totalorder %s15, 0
    %p110 = por %p108, %p109
    %p111 = scmp.le.s32.totalorder 1, %s9
    %p112 = scmp.lt.s32.totalorder %s9, 3
    %p113 = pnand %p111, %p112
    %p114 = pneg %p113
    // Predicated region
    $region9: #{conv_forward.3} parent=5 // pred_check
      _
    $region10: #{conv_forward.3} parent=5 // pred_check_branch
      %116 = sbr.rel (%p113) target = $region12
    $region11: #{conv_forward.3} parent=5 // pred_region
      %s117 = ssub.s32 %s9, 1
      // Predicated region
      $region13: #{conv_forward.3} parent=11 // pred_check
        %p118 = pneg %p56
      $region14: #{conv_forward.3} parent=11 // pred_check_branch
        %120 = sbr.rel (%p118) target = $region16
      $region15: #{conv_forward.3} parent=11 // pred_region
        _
      $region16: #{conv_forward.3} parent=11 // pred_fallthru
        _
      // Predicated region
      $region17: #{conv_forward.3} parent=11 // pred_check
        %p121 = pneg %p77
      $region18: #{conv_forward.3} parent=11 // pred_check_branch
        %123 = sbr.rel (%p121) target = $region20
      $region19: #{conv_forward.3} parent=11 // pred_region
        _
      $region20: #{conv_forward.3} parent=11 // pred_fallthru
        _
    $region12: #{conv_forward.3} parent=5 // pred_fallthru
      _
    %p124 = scmp.lt.s32.totalorder %s9, 2
    // Predicated region
    $region21: #{conv_forward.3} parent=5 // pred_check
      %p125 = pneg %p124
    $region22: #{conv_forward.3} parent=5 // pred_check_branch
      %127 = sbr.rel (%p125) target = $region24
    $region23: #{conv_forward.3} parent=5 // pred_region
      // Predicated region
      $region25: #{conv_forward.3} parent=23 // pred_check
        %p128 = pneg %p29
      $region26: #{conv_forward.3} parent=23 // pred_check_branch
        %130 = sbr.rel (%p128) target = $region28
      $region27: #{conv_forward.3} parent=23 // pred_region
        %s131 = smul.u32 32, %s9
        %p132 = scmp.lt.s32.totalorder %s131, 63
        %s133 = scalar_select %p132, %s131, 63
        %s134 = smul.addr %s133, 4
        %s135 = scalar_lea.vmem %s0, %s134
        %s136 = smul.u32 32, %s9
      $region28: #{conv_forward.3} parent=23 // pred_fallthru
        _
    $region24: #{conv_forward.3} parent=5 // pred_fallthru
      _
    %p137 = scmp.le.s32.totalorder 1, %s9
    %p138 = scmp.lt.s32.totalorder %s9, 3
    %p139 = pnand %p137, %p138
    %p140 = pneg %p139
    // Predicated region
    $region29: #{conv_forward.3} parent=5 // pred_check
      _
    $region30: #{conv_forward.3} parent=5 // pred_check_branch
      %142 = sbr.rel (%p139) target = $region32
    $region31: #{conv_forward.3} parent=5 // pred_region
      %s143 = ssub.s32 %s9, 1
      %s144 = smul.u32 32, %s14
      %p145 = scmp.lt.s32.totalorder %s144, 63
      %s146 = scalar_select %p145, %s144, 63
      %s147 = smul.addr %s146, 4
      %s148 = scalar_lea.vmem %s0, %s147
      %p149 = pneg %p35
      %p150 = pneg %p32
      %p151 = pneg %p56
      %p152 = pneg %p53
      %p153 = pneg %p77
      %p154 = pneg %p74
      %p155 = pneg %p103
      %p156 = pneg %p100
      %s157 = smul.u32 32, %s14
      %p158 = scmp.lt.s32.totalorder %s157, 63
      %s159 = scalar_select %p158, %s157, 63
      %s160 = smul.addr %s159, 8
      %s161 = scalar_lea.vmem %s3, %s160
      %s162 = smul.u32 32, %s14
      %p163 = scmp.lt.s32.totalorder %s162, 63
      %s164 = scalar_select %p163, %s162, 63
      %s165 = smul.addr %s164, 4
      %s166 = scalar_lea.vmem %s0, %s165
      %s167 = smul.u32 32, %s14
      %s168 = smul.u32 32, %s14
      %p169 = scmp.lt.s32.totalorder %s168, 63
      %s170 = scalar_select %p169, %s168, 63
      %s171 = smul.addr %s170, 8
      %s172 = scalar_lea.vmem %s3, %s171
      %s173 = smul.u32 32, %s14
      %v174 = vld [vmem:[%s166] sm:$0xf]
      %v175 = vld [vmem:[%s166 + $0x4] sm:$0xf]
      %v176 = vld [vmem:[%s166 + $0x8] sm:$0xf]
      %v177 = vld [vmem:[%s166 + $0xc] sm:$0xf]
      %v178 = vld [vmem:[%s166 + $0x10] sm:$0xf]
      %v179 = vld [vmem:[%s166 + $0x14] sm:$0xf]
      %v180 = vld [vmem:[%s166 + $0x18] sm:$0xf]
      %v181 = vld [vmem:[%s166 + $0x1c] sm:$0xf]
      %v182 = vld [vmem:[%s166 + $0x20] sm:$0xf]
      %v183 = vld [vmem:[%s166 + $0x24] sm:$0xf]
      %v184 = vld [vmem:[%s166 + $0x28] sm:$0xf]
      %v185 = vld [vmem:[%s166 + $0x2c] sm:$0xf]
      %v186 = vld [vmem:[%s166 + $0x30] sm:$0xf]
      %v187 = vld [vmem:[%s166 + $0x34] sm:$0xf]
      %v188 = vld [vmem:[%s166 + $0x38] sm:$0xf]
      %v189 = vld [vmem:[%s166 + $0x3c] sm:$0xf]
      %v190 = vld [vmem:[%s166 + $0x40] sm:$0xf]
      %v191 = vld [vmem:[%s166 + $0x44] sm:$0xf]
      %v192 = vld [vmem:[%s166 + $0x48] sm:$0xf]
      %v193 = vld [vmem:[%s166 + $0x4c] sm:$0xf]
      %v194 = vld [vmem:[%s166 + $0x50] sm:$0xf]
      %v195 = vld [vmem:[%s166 + $0x54] sm:$0xf]
      %v196 = vld [vmem:[%s166 + $0x58] sm:$0xf]
      %v197 = vld [vmem:[%s166 + $0x5c] sm:$0xf]
      %v198 = vld [vmem:[%s166 + $0x60] sm:$0xf]
      %v199 = vld [vmem:[%s166 + $0x64] sm:$0xf]
      %v200 = vld [vmem:[%s166 + $0x68] sm:$0xf]
      %v201 = vld [vmem:[%s166 + $0x6c] sm:$0xf]
      %v202 = vld [vmem:[%s166 + $0x70] sm:$0xf]
      %v203 = vld [vmem:[%s166 + $0x74] sm:$0xf]
      %v204 = vld [vmem:[%s166 + $0x78] sm:$0xf]
      %v205 = vld [vmem:[%s166 + $0x7c] sm:$0xf]
      %v206 = vunpack.c.l.bf16 %v174
      %v207 = vunpack.c.l.bf16 %v175
      %v208 = vunpack.c.l.bf16 %v176
      %v209 = vunpack.c.l.bf16 %v177
      %v210 = vunpack.c.l.bf16 %v178
      %v211 = vunpack.c.l.bf16 %v179
      %v212 = vunpack.c.l.bf16 %v180
      %v213 = vunpack.c.l.bf16 %v181
      %v214 = vunpack.c.l.bf16 %v182
      %v215 = vunpack.c.l.bf16 %v183
      %v216 = vunpack.c.l.bf16 %v184
      %v217 = vunpack.c.l.bf16 %v185
      %v218 = vunpack.c.l.bf16 %v186
      %v219 = vunpack.c.l.bf16 %v187
      %v220 = vunpack.c.l.bf16 %v188
      %v221 = vunpack.c.l.bf16 %v189
      %v222 = vunpack.c.l.bf16 %v190
      %v223 = vunpack.c.l.bf16 %v191
      %v224 = vunpack.c.l.bf16 %v192
      %v225 = vunpack.c.l.bf16 %v193
      %v226 = vunpack.c.l.bf16 %v194
      %v227 = vunpack.c.l.bf16 %v195
      %v228 = vunpack.c.l.bf16 %v196
      %v229 = vunpack.c.l.bf16 %v197
      %v230 = vunpack.c.l.bf16 %v198
      %v231 = vunpack.c.l.bf16 %v199
      %v232 = vunpack.c.l.bf16 %v200
      %v233 = vunpack.c.l.bf16 %v201
      %v234 = vunpack.c.l.bf16 %v202
      %v235 = vunpack.c.l.bf16 %v203
      %v236 = vunpack.c.l.bf16 %v204
      %v237 = vunpack.c.l.bf16 %v205
      %v238 = vld [vmem:[%s1] sm:$0x1]
      %v240 = vlaneseq
      %v241 = vshrl.u32 %v240, 7
      %v242 = vsub.s32 0, %v241
      %v243 = vrot.slane %v238, %v242
      %v245 = vmul.f32 %v206, %v243
      %v246 = vmul.f32 %v207, %v243
      %v247 = vmul.f32 %v208, %v243
      %v248 = vmul.f32 %v209, %v243
      %v249 = vmul.f32 %v210, %v243
      %v250 = vmul.f32 %v211, %v243
      %v251 = vmul.f32 %v212, %v243
      %v252 = vmul.f32 %v213, %v243
      %v253 = vmul.f32 %v214, %v243
      %v254 = vmul.f32 %v215, %v243
      %v255 = vmul.f32 %v216, %v243
      %v256 = vmul.f32 %v217, %v243
      %v257 = vmul.f32 %v218, %v243
      %v258 = vmul.f32 %v219, %v243
      %v259 = vmul.f32 %v220, %v243
      %v260 = vmul.f32 %v221, %v243
      %v261 = vmul.f32 %v222, %v243
      %v262 = vmul.f32 %v223, %v243
      %v263 = vmul.f32 %v224, %v243
      %v264 = vmul.f32 %v225, %v243
      %v265 = vmul.f32 %v226, %v243
      %v266 = vmul.f32 %v227, %v243
      %v267 = vmul.f32 %v228, %v243
      %v268 = vmul.f32 %v229, %v243
      %v269 = vmul.f32 %v230, %v243
      %v270 = vmul.f32 %v231, %v243
      %v271 = vmul.f32 %v232, %v243
      %v272 = vmul.f32 %v233, %v243
      %v273 = vmul.f32 %v234, %v243
      %v274 = vmul.f32 %v235, %v243
      %v275 = vmul.f32 %v236, %v243
      %v276 = vmul.f32 %v237, %v243
      %v277 = vld [vmem:[%s2] sm:$0x1]
      %v279 = vlaneseq
      %v280 = vshrl.u32 %v279, 7
      %v281 = vsub.s32 0, %v280
      %v282 = vrot.slane %v277, %v281
      %v284 = vadd.f32 %v245, %v282
      %v285 = vadd.f32 %v246, %v282
      %v286 = vadd.f32 %v247, %v282
      %v287 = vadd.f32 %v248, %v282
      %v288 = vadd.f32 %v249, %v282
      %v289 = vadd.f32 %v250, %v282
      %v290 = vadd.f32 %v251, %v282
      %v291 = vadd.f32 %v252, %v282
      %v292 = vadd.f32 %v253, %v282
      %v293 = vadd.f32 %v254, %v282
      %v294 = vadd.f32 %v255, %v282
      %v295 = vadd.f32 %v256, %v282
      %v296 = vadd.f32 %v257, %v282
      %v297 = vadd.f32 %v258, %v282
      %v298 = vadd.f32 %v259, %v282
      %v299 = vadd.f32 %v260, %v282
      %v300 = vadd.f32 %v261, %v282
      %v301 = vadd.f32 %v262, %v282
      %v302 = vadd.f32 %v263, %v282
      %v303 = vadd.f32 %v264, %v282
      %v304 = vadd.f32 %v265, %v282
      %v305 = vadd.f32 %v266, %v282
      %v306 = vadd.f32 %v267, %v282
      %v307 = vadd.f32 %v268, %v282
      %v308 = vadd.f32 %v269, %v282
      %v309 = vadd.f32 %v270, %v282
      %v310 = vadd.f32 %v271, %v282
      %v311 = vadd.f32 %v272, %v282
      %v312 = vadd.f32 %v273, %v282
      %v313 = vadd.f32 %v274, %v282
      %v314 = vadd.f32 %v275, %v282
      %v315 = vadd.f32 %v276, %v282
      %vm316 = vcmp.gt.f32.partialorder %v284, 0.0
      %vm317 = vcmp.gt.f32.partialorder %v285, 0.0
      %vm318 = vcmp.gt.f32.partialorder %v286, 0.0
      %vm319 = vcmp.gt.f32.partialorder %v287, 0.0
      %vm320 = vcmp.gt.f32.partialorder %v288, 0.0
      %vm321 = vcmp.gt.f32.partialorder %v289, 0.0
      %vm322 = vcmp.gt.f32.partialorder %v290, 0.0
      %vm323 = vcmp.gt.f32.partialorder %v291, 0.0
      %vm324 = vcmp.gt.f32.partialorder %v292, 0.0
      %vm325 = vcmp.gt.f32.partialorder %v293, 0.0
      %vm326 = vcmp.gt.f32.partialorder %v294, 0.0
      %vm327 = vcmp.gt.f32.partialorder %v295, 0.0
      %vm328 = vcmp.gt.f32.partialorder %v296, 0.0
      %vm329 = vcmp.gt.f32.partialorder %v297, 0.0
      %vm330 = vcmp.gt.f32.partialorder %v298, 0.0
      %vm331 = vcmp.gt.f32.partialorder %v299, 0.0
      %vm332 = vcmp.gt.f32.partialorder %v300, 0.0
      %vm333 = vcmp.gt.f32.partialorder %v301, 0.0
      %vm334 = vcmp.gt.f32.partialorder %v302, 0.0
      %vm335 = vcmp.gt.f32.partialorder %v303, 0.0
      %vm336 = vcmp.gt.f32.partialorder %v304, 0.0
      %vm337 = vcmp.gt.f32.partialorder %v305, 0.0
      %vm338 = vcmp.gt.f32.partialorder %v306, 0.0
      %vm339 = vcmp.gt.f32.partialorder %v307, 0.0
      %vm340 = vcmp.gt.f32.partialorder %v308, 0.0
      %vm341 = vcmp.gt.f32.partialorder %v309, 0.0
      %vm342 = vcmp.gt.f32.partialorder %v310, 0.0
      %vm343 = vcmp.gt.f32.partialorder %v311, 0.0
      %vm344 = vcmp.gt.f32.partialorder %v312, 0.0
      %vm345 = vcmp.gt.f32.partialorder %v313, 0.0
      %vm346 = vcmp.gt.f32.partialorder %v314, 0.0
      %vm347 = vcmp.gt.f32.partialorder %v315, 0.0
      %v348 = vmul.f32 %v284, 0.1
      %v349 = vmul.f32 %v285, 0.1
      %v350 = vmul.f32 %v286, 0.1
      %v351 = vmul.f32 %v287, 0.1
      %v352 = vmul.f32 %v288, 0.1
      %v353 = vmul.f32 %v289, 0.1
      %v354 = vmul.f32 %v290, 0.1
      %v355 = vmul.f32 %v291, 0.1
      %v356 = vmul.f32 %v292, 0.1
      %v357 = vmul.f32 %v293, 0.1
      %v358 = vmul.f32 %v294, 0.1
      %v359 = vmul.f32 %v295, 0.1
      %v360 = vmul.f32 %v296, 0.1
      %v361 = vmul.f32 %v297, 0.1
      %v362 = vmul.f32 %v298, 0.1
      %v363 = vmul.f32 %v299, 0.1
      %v364 = vmul.f32 %v300, 0.1
      %v365 = vmul.f32 %v301, 0.1
      %v366 = vmul.f32 %v302, 0.1
      %v367 = vmul.f32 %v303, 0.1
      %v368 = vmul.f32 %v304, 0.1
      %v369 = vmul.f32 %v305, 0.1
      %v370 = vmul.f32 %v306, 0.1
      %v371 = vmul.f32 %v307, 0.1
      %v372 = vmul.f32 %v308, 0.1
      %v373 = vmul.f32 %v309, 0.1
      %v374 = vmul.f32 %v310, 0.1
      %v375 = vmul.f32 %v311, 0.1
      %v376 = vmul.f32 %v312, 0.1
      %v377 = vmul.f32 %v313, 0.1
      %v378 = vmul.f32 %v314, 0.1
      %v379 = vmul.f32 %v315, 0.1
      %v380 = vsel %vm316, %v284, %v348
      %v381 = vsel %vm317, %v285, %v349
      %v382 = vsel %vm318, %v286, %v350
      %v383 = vsel %vm319, %v287, %v351
      %v384 = vsel %vm320, %v288, %v352
      %v385 = vsel %vm321, %v289, %v353
      %v386 = vsel %vm322, %v290, %v354
      %v387 = vsel %vm323, %v291, %v355
      %v388 = vsel %vm324, %v292, %v356
      %v389 = vsel %vm325, %v293, %v357
      %v390 = vsel %vm326, %v294, %v358
      %v391 = vsel %vm327, %v295, %v359
      %v392 = vsel %vm328, %v296, %v360
      %v393 = vsel %vm329, %v297, %v361
      %v394 = vsel %vm330, %v298, %v362
      %v395 = vsel %vm331, %v299, %v363
      %v396 = vsel %vm332, %v300, %v364
      %v397 = vsel %vm333, %v301, %v365
      %v398 = vsel %vm334, %v302, %v366
      %v399 = vsel %vm335, %v303, %v367
      %v400 = vsel %vm336, %v304, %v368
      %v401 = vsel %vm337, %v305, %v369
      %v402 = vsel %vm338, %v306, %v370
      %v403 = vsel %vm339, %v307, %v371
      %v404 = vsel %vm340, %v308, %v372
      %v405 = vsel %vm341, %v309, %v373
      %v406 = vsel %vm342, %v310, %v374
      %v407 = vsel %vm343, %v311, %v375
      %v408 = vsel %vm344, %v312, %v376
      %v409 = vsel %vm345, %v313, %v377
      %v410 = vsel %vm346, %v314, %v378
      %v411 = vsel %vm347, %v315, %v379
      %412 = vst [vmem:[%s172] sm:$0xff] %v380
      %413 = vst [vmem:[%s172 + $0x8] sm:$0xff] %v381
      %414 = vst [vmem:[%s172 + $0x10] sm:$0xff] %v382
      %415 = vst [vmem:[%s172 + $0x18] sm:$0xff] %v383
      %416 = vst [vmem:[%s172 + $0x20] sm:$0xff] %v384
      %417 = vst [vmem:[%s172 + $0x28] sm:$0xff] %v385
      %418 = vst [vmem:[%s172 + $0x30] sm:$0xff] %v386
      %419 = vst [vmem:[%s172 + $0x38] sm:$0xff] %v387
      %420 = vst [vmem:[%s172 + $0x40] sm:$0xff] %v388
      %421 = vst [vmem:[%s172 + $0x48] sm:$0xff] %v389
      %422 = vst [vmem:[%s172 + $0x50] sm:$0xff] %v390
      %423 = vst [vmem:[%s172 + $0x58] sm:$0xff] %v391
      %424 = vst [vmem:[%s172 + $0x60] sm:$0xff] %v392
      %425 = vst [vmem:[%s172 + $0x68] sm:$0xff] %v393
      %426 = vst [vmem:[%s172 + $0x70] sm:$0xff] %v394
      %427 = vst [vmem:[%s172 + $0x78] sm:$0xff] %v395
      %428 = vst [vmem:[%s172 + $0x80] sm:$0xff] %v396
      %429 = vst [vmem:[%s172 + $0x88] sm:$0xff] %v397
      %430 = vst [vmem:[%s172 + $0x90] sm:$0xff] %v398
      %431 = vst [vmem:[%s172 + $0x98] sm:$0xff] %v399
      %432 = vst [vmem:[%s172 + $0xa0] sm:$0xff] %v400
      %433 = vst [vmem:[%s172 + $0xa8] sm:$0xff] %v401
      %434 = vst [vmem:[%s172 + $0xb0] sm:$0xff] %v402
      %435 = vst [vmem:[%s172 + $0xb8] sm:$0xff] %v403
      %436 = vst [vmem:[%s172 + $0xc0] sm:$0xff] %v404
      %437 = vst [vmem:[%s172 + $0xc8] sm:$0xff] %v405
      %438 = vst [vmem:[%s172 + $0xd0] sm:$0xff] %v406
      %439 = vst [vmem:[%s172 + $0xd8] sm:$0xff] %v407
      %440 = vst [vmem:[%s172 + $0xe0] sm:$0xff] %v408
      %441 = vst [vmem:[%s172 + $0xe8] sm:$0xff] %v409
      %442 = vst [vmem:[%s172 + $0xf0] sm:$0xff] %v410
      %443 = vst [vmem:[%s172 + $0xf8] sm:$0xff] %v411
      %s444 = smul.u32 32, %s14
      %p445 = scmp.lt.s32.totalorder %s444, 63
      %s446 = scalar_select %p445, %s444, 63
      %s447 = smul.addr %s446, 8
      %s448 = scalar_lea.vmem %s3, %s447
      // Predicated region
      $region33: #{conv_forward.3} parent=31 // pred_check
        %p449 = pneg %p100
      $region34: #{conv_forward.3} parent=31 // pred_check_branch
        %451 = sbr.rel (%p449) target = $region36
      $region35: #{conv_forward.3} parent=31 // pred_region
        %s452 = smul.u32 32, %s14
      $region36: #{conv_forward.3} parent=31 // pred_fallthru
        _
    $region32: #{conv_forward.3} parent=5 // pred_fallthru
      _
    %p453 = scmp.le.s32.totalorder 2, %s9
    // Predicated region
    $region37: #{conv_forward.3} parent=5 // pred_check
      %p454 = pneg %p453
    $region38: #{conv_forward.3} parent=5 // pred_check_branch
      %456 = sbr.rel (%p454) target = $region40
    $region39: #{conv_forward.3} parent=5 // pred_region
      %s457 = ssub.s32 %s9, 2
      // Predicated region
      $region41: #{conv_forward.3} parent=39 // pred_check
        %p458 = pneg %p106
      $region42: #{conv_forward.3} parent=39 // pred_check_branch
        %460 = sbr.rel (%p458) target = $region44
      $region43: #{conv_forward.3} parent=39 // pred_region
        %s461 = smul.u32 32, %s15
        %p462 = scmp.lt.s32.totalorder %s461, 63
        %s463 = scalar_select %p462, %s461, 63
        %s464 = smul.addr %s463, 8
        %s465 = scalar_lea.vmem %s3, %s464
      $region44: #{conv_forward.3} parent=39 // pred_fallthru
        _
    $region40: #{conv_forward.3} parent=5 // pred_fallthru
      _
  $region6: #{conv_forward.3} parent=0 // loop_footer
    %s13 = sadd.s32 1, %s9
  $region7: #{conv_forward.3} parent=0 // loop_footer_branch
    %8 = sbr.rel target = $region3
  $region8: #{conv_forward.3} parent=0 // loop_exit
    _

// kernel: conv_forward.2
$region0: #{conv_forward.2}
  #allocation0 [shape = 'u32[]', space=smem, size = 0x4, offset = 0x4, fixed_abs, tag = 'smem constant byte address 0x4 - core index']
  #allocation1 [shape = 'u32[144,128]{1,0:T(1,128)}', space=vmem, size = 0x12000, scoped, tag = 'internal scratch']
  #allocation2 [shape = 'f32[256,128]{1,0:T(8,128)}', space=vmem, size = 0x20000, scoped, tag = 'scratch operand']
  %s0 = inlined_call_operand.vmem [shape: bf16[512,128], index: 0, kind: input, shape index: {}]
  %s1 = inlined_call_operand.vmem [shape: bf16[128,128], index: 1, kind: input, shape index: {}]
  %s2 = inlined_call_operand.vmem [shape: bf16[512,128], index: 2, kind: output, shape index: {0}]
  %s3 = inlined_call_operand.vmem [shape: f32[2,1,128], index: 3, kind: output, shape index: {1}]
  %s4 = inlined_call_operand.vmem [shape: f32[2,1,128], index: 4, kind: output, shape index: {2}]
  %5 = xla_tuple %s2, %s3, %s4
  %s6 = sld [smem:[#allocation0]]
  $region65: #{conv_forward.2} parent=0
    _
  %s8 = ssub.s32 1, %s6
  %s9 = scalar_select 0, %s8, %s6
  loop: start=0, step=1, limit=4
  $region2: #{conv_forward.2} parent=0 // loop_pre_header
    _
  $region3: #{conv_forward.2} parent=0 // loop_header
    %s11 = sphi 0, %s15
    %p12 = scmp.ge.s32.totalorder %s11, 4
    %s18 = sphi 0, %s30
    %s19 = sphi 0, %s26
    %s20 = sphi 0, %s18
    %s21 = sphi 0, %s19
    %s22 = sphi 0, %s20
    %s23 = sphi 0, %s21
    %s35 = sphi 0, %s37
    %s38 = sphi 0, %s35
    %s39 = sphi 0, %s38
    %s55 = sphi 0, %s39
    %s59 = sphi 0, %s59
    %s61 = sphi 0, %s59
    %s62 = sphi 0, %s61
    %s76 = sphi 0, %s62
    %s82 = sphi 0, %s84
    %s85 = sphi 0, %s82
    %s86 = sphi 0, %s85
    %s102 = sphi 0, %s86
    %s108 = sphi 0, %s110
    %s111 = sphi 0, %s108
    %s112 = sphi 0, %s111
    %s128 = sphi 0, %s112
    %s134 = sphi 0, %s136
    %s137 = sphi 0, %s134
    %s138 = sphi 0, %s137
    %s154 = sphi 0, %s138
  $region4: #{conv_forward.2} parent=0 // loop_header_branch
    %14 = sbr.rel (%p12) target = $region8
  $region5: #{conv_forward.2} parent=0 // loop_body
    %s16 = ssub.s32 %s11, 1
    %s17 = ssub.s32 %s11, 2
    %s24 = sadd.s32 1, %s19
    %p25 = scmp.ge.s32.totalorder %s24, 1
    %s26 = scalar_select %p25, 0, %s24
    %s27 = sadd.s32 1, %s18
    %s28 = scalar_select %p25, %s27, %s18
    %p29 = scmp.ge.s32.totalorder %s28, 2
    %s30 = scalar_select %p29, 0, %s28
    %s31 = ssub.s32 %s18, %s30
    %s32 = ssub.s32 %s19, %s26
    %s33 = sor.u32 %s31, %s32
    %p34 = scmp.eq.s32.totalorder %s33, 0
    %s36 = sadd.s32 %s35, 1
    %s37 = scalar_select %p34, %s35, %s36
    %p40 = pneg %p34
    %p41 = scmp.eq.s32.totalorder %s11, 1
    %p42 = por %p40, %p41
    %p43 = scmp.ne.s32.totalorder %s35, %s38
    %p44 = scmp.eq.s32.totalorder %s11, 0
    %p45 = por %p43, %p44
    %p46 = scmp.ne.s32.totalorder %s35, %s38
    %p47 = scmp.eq.s32.totalorder %s16, 1
    %p48 = por %p46, %p47
    %p49 = scmp.ne.s32.totalorder %s38, %s39
    %p50 = scmp.eq.s32.totalorder %s16, 0
    %p51 = por %p49, %p50
    %p52 = scmp.ne.s32.totalorder %s38, %s39
    %p53 = scmp.eq.s32.totalorder %s17, 1
    %p54 = por %p52, %p53
    %p56 = scmp.ne.s32.totalorder %s39, %s55
    %p57 = scmp.eq.s32.totalorder %s17, 0
    %p58 = por %p56, %p57
    %s60 = sadd.s32 %s59, 1
    %p63 = scmp.eq.s32.totalorder %s11, 1
    %p64 = scmp.ne.s32.totalorder %s59, %s61
    %p65 = scmp.eq.s32.totalorder %s11, 0
    %p66 = por %p64, %p65
    %p67 = scmp.ne.s32.totalorder %s59, %s61
    %p68 = scmp.eq.s32.totalorder %s16, 1
    %p69 = por %p67, %p68
    %p70 = scmp.ne.s32.totalorder %s61, %s62
    %p71 = scmp.eq.s32.totalorder %s16, 0
    %p72 = por %p70, %p71
    %p73 = scmp.ne.s32.totalorder %s61, %s62
    %p74 = scmp.eq.s32.totalorder %s17, 1
    %p75 = por %p73, %p74
    %p77 = scmp.ne.s32.totalorder %s62, %s76
    %p78 = scmp.eq.s32.totalorder %s17, 0
    %p79 = por %p77, %p78
    %s80 = ssub.s32 %s18, %s30
    %p81 = scmp.eq.s32.totalorder %s80, 0
    %s83 = sadd.s32 %s82, 1
    %s84 = scalar_select %p81, %s82, %s83
    %p87 = pneg %p81
    %p88 = scmp.eq.s32.totalorder %s11, 1
    %p89 = por %p87, %p88
    %p90 = scmp.ne.s32.totalorder %s82, %s85
    %p91 = scmp.eq.s32.totalorder %s11, 0
    %p92 = por %p90, %p91
    %p93 = scmp.ne.s32.totalorder %s82, %s85
    %p94 = scmp.eq.s32.totalorder %s16, 1
    %p95 = por %p93, %p94
    %p96 = scmp.ne.s32.totalorder %s85, %s86
    %p97 = scmp.eq.s32.totalorder %s16, 0
    %p98 = por %p96, %p97
    %p99 = scmp.ne.s32.totalorder %s85, %s86
    %p100 = scmp.eq.s32.totalorder %s17, 1
    %p101 = por %p99, %p100
    %p103 = scmp.ne.s32.totalorder %s86, %s102
    %p104 = scmp.eq.s32.totalorder %s17, 0
    %p105 = por %p103, %p104
    %s106 = ssub.s32 %s18, %s30
    %p107 = scmp.eq.s32.totalorder %s106, 0
    %s109 = sadd.s32 %s108, 1
    %s110 = scalar_select %p107, %s108, %s109
    %p113 = pneg %p107
    %p114 = scmp.eq.s32.totalorder %s11, 1
    %p115 = por %p113, %p114
    %p116 = scmp.ne.s32.totalorder %s108, %s111
    %p117 = scmp.eq.s32.totalorder %s11, 0
    %p118 = por %p116, %p117
    %p119 = scmp.ne.s32.totalorder %s108, %s111
    %p120 = scmp.eq.s32.totalorder %s16, 1
    %p121 = por %p119, %p120
    %p122 = scmp.ne.s32.totalorder %s111, %s112
    %p123 = scmp.eq.s32.totalorder %s16, 0
    %p124 = por %p122, %p123
    %p125 = scmp.ne.s32.totalorder %s111, %s112
    %p126 = scmp.eq.s32.totalorder %s17, 1
    %p127 = por %p125, %p126
    %p129 = scmp.ne.s32.totalorder %s112, %s128
    %p130 = scmp.eq.s32.totalorder %s17, 0
    %p131 = por %p129, %p130
    %s132 = ssub.s32 %s18, %s30
    %p133 = scmp.eq.s32.totalorder %s132, 0
    %s135 = sadd.s32 %s134, 1
    %s136 = scalar_select %p133, %s134, %s135
    %p139 = pneg %p133
    %p140 = scmp.eq.s32.totalorder %s11, 1
    %p141 = por %p139, %p140
    %p142 = scmp.ne.s32.totalorder %s134, %s137
    %p143 = scmp.eq.s32.totalorder %s11, 0
    %p144 = por %p142, %p143
    %p145 = scmp.ne.s32.totalorder %s134, %s137
    %p146 = scmp.eq.s32.totalorder %s16, 1
    %p147 = por %p145, %p146
    %p148 = scmp.ne.s32.totalorder %s137, %s138
    %p149 = scmp.eq.s32.totalorder %s16, 0
    %p150 = por %p148, %p149
    %p151 = scmp.ne.s32.totalorder %s137, %s138
    %p152 = scmp.eq.s32.totalorder %s17, 1
    %p153 = por %p151, %p152
    %p155 = scmp.ne.s32.totalorder %s138, %s154
    %p156 = scmp.eq.s32.totalorder %s17, 0
    %p157 = por %p155, %p156
    %p158 = scmp.le.s32.totalorder 1, %s11
    %p159 = scmp.lt.s32.totalorder %s11, 3
    %p160 = pnand %p158, %p159
    %p161 = pneg %p160
    // Predicated region
    $region9: #{conv_forward.2} parent=5 // pred_check
      _
    $region10: #{conv_forward.2} parent=5 // pred_check_branch
      %163 = sbr.rel (%p160) target = $region12
    $region11: #{conv_forward.2} parent=5 // pred_region
      %s164 = ssub.s32 %s11, 1
      // Predicated region
      $region13: #{conv_forward.2} parent=11 // pred_check
        %p165 = pneg %p72
      $region14: #{conv_forward.2} parent=11 // pred_check_branch
        %167 = sbr.rel (%p165) target = $region16
      $region15: #{conv_forward.2} parent=11 // pred_region
        _
      $region16: #{conv_forward.2} parent=11 // pred_fallthru
        _
    $region12: #{conv_forward.2} parent=5 // pred_fallthru
      _
    %p168 = scmp.lt.s32.totalorder %s11, 2
    // Predicated region
    $region17: #{conv_forward.2} parent=5 // pred_check
      %p169 = pneg %p168
    $region18: #{conv_forward.2} parent=5 // pred_check_branch
      %171 = sbr.rel (%p169) target = $region20
    $region19: #{conv_forward.2} parent=5 // pred_region
      // Predicated region
      $region21: #{conv_forward.2} parent=19 // pred_check
        %p172 = pneg %p45
      $region22: #{conv_forward.2} parent=19 // pred_check_branch
        %174 = sbr.rel (%p172) target = $region24
      $region23: #{conv_forward.2} parent=19 // pred_region
        %s175 = smul.u32 32, %s18
        %p176 = scmp.lt.s32.totalorder %s175, 63
        %s177 = scalar_select %p176, %s175, 63
        %p178 = scmp.lt.s32.totalorder %s19, 0
        %s179 = scalar_select %p178, %s19, 0
        %s180 = sadd.s32 %s179, %s177
        %s181 = smul.addr %s180, 4
        %s182 = scalar_lea.vmem %s0, %s181
        %s183 = smul.u32 32, %s18
      $region24: #{conv_forward.2} parent=19 // pred_fallthru
        _
    $region20: #{conv_forward.2} parent=5 // pred_fallthru
      _
    %p184 = scmp.le.s32.totalorder 1, %s11
    %p185 = scmp.lt.s32.totalorder %s11, 3
    %p186 = pnand %p184, %p185
    %p187 = pneg %p186
    // Predicated region
    $region25: #{conv_forward.2} parent=5 // pred_check
      _
    $region26: #{conv_forward.2} parent=5 // pred_check_branch
      %189 = sbr.rel (%p186) target = $region28
    $region27: #{conv_forward.2} parent=5 // pred_region
      %s190 = ssub.s32 %s11, 1
      %s191 = smul.u32 32, %s20
      %p192 = scmp.lt.s32.totalorder %s191, 63
      %s193 = scalar_select %p192, %s191, 63
      %p194 = scmp.lt.s32.totalorder %s21, 0
      %s195 = scalar_select %p194, %s21, 0
      %s196 = sadd.s32 %s195, %s193
      %s197 = smul.addr %s196, 4
      %s198 = scalar_lea.vmem %s0, %s197
      %p199 = pneg %p51
      %p200 = pneg %p48
      %p201 = pneg %p72
      %p202 = pneg %p69
      %p203 = pneg %p98
      %p204 = pneg %p95
      %s205 = smul.u32 32, %s20
      %p206 = scmp.lt.s32.totalorder %s205, 63
      %s207 = scalar_select %p206, %s205, 63
      %s208 = smul.addr %s207, 4
      %s209 = scalar_lea.vmem %s2, %s208
      %p210 = pneg %p124
      %p211 = pneg %p121
      %p212 = scmp.lt.s32.totalorder %s20, 1
      %s213 = scalar_select %p212, %s20, 1
      %s214 = scalar_lea.vmem %s3, %s213
      %p215 = pneg %p150
      %p216 = pneg %p147
      %p217 = scmp.lt.s32.totalorder %s20, 1
      %s218 = scalar_select %p217, %s20, 1
      %s219 = scalar_lea.vmem %s4, %s218
      %s220 = smul.u32 32, %s20
      %p221 = scmp.lt.s32.totalorder %s220, 63
      %s222 = scalar_select %p221, %s220, 63
      %p223 = scmp.lt.s32.totalorder %s21, 0
      %s224 = scalar_select %p223, %s21, 0
      %s225 = sadd.s32 %s224, %s222
      %s226 = smul.addr %s225, 4
      %s227 = scalar_lea.vmem %s0, %s226
      %s228 = smul.u32 32, %s20
      %s229 = smul.u32 32, %s20
      %p230 = scmp.lt.s32.totalorder %s229, 63
      %s231 = scalar_select %p230, %s229, 63
      %s232 = smul.addr %s231, 4
      %s233 = scalar_lea.vmem %s2, %s232
      %s234 = smul.u32 32, %s20
      %p235 = scmp.lt.s32.totalorder %s20, 1
      %s236 = scalar_select %p235, %s20, 1
      %s237 = scalar_lea.vmem %s3, %s236
      %p238 = scmp.lt.s32.totalorder %s20, 1
      %s239 = scalar_select %p238, %s20, 1
      %s240 = scalar_lea.vmem %s4, %s239
      %p242 = scmp.eq.s32.totalorder %s21, 0
      // Predicated region
      $region29: #{conv_forward.2} parent=27 // pred_check
        %p243 = pneg %p242
      $region30: #{conv_forward.2} parent=27 // pred_check_branch
        %245 = sbr.rel (%p243) target = $region32
      $region31: #{conv_forward.2} parent=27 // pred_region
        %246 = vst [vmem:[#allocation2] sm:$0xff] 0.0
        %247 = vst [vmem:[#allocation2 + $0x8] sm:$0xff] 0.0
        %248 = vst [vmem:[#allocation2 + $0x10] sm:$0xff] 0.0
        %249 = vst [vmem:[#allocation2 + $0x18] sm:$0xff] 0.0
        %250 = vst [vmem:[#allocation2 + $0x20] sm:$0xff] 0.0
        %251 = vst [vmem:[#allocation2 + $0x28] sm:$0xff] 0.0
        %252 = vst [vmem:[#allocation2 + $0x30] sm:$0xff] 0.0
        %253 = vst [vmem:[#allocation2 + $0x38] sm:$0xff] 0.0
        %254 = vst [vmem:[#allocation2 + $0x40] sm:$0xff] 0.0
        %255 = vst [vmem:[#allocation2 + $0x48] sm:$0xff] 0.0
        %256 = vst [vmem:[#allocation2 + $0x50] sm:$0xff] 0.0
        %257 = vst [vmem:[#allocation2 + $0x58] sm:$0xff] 0.0
        %258 = vst [vmem:[#allocation2 + $0x60] sm:$0xff] 0.0
        %259 = vst [vmem:[#allocation2 + $0x68] sm:$0xff] 0.0
        %260 = vst [vmem:[#allocation2 + $0x70] sm:$0xff] 0.0
        %261 = vst [vmem:[#allocation2 + $0x78] sm:$0xff] 0.0
        %262 = vst [vmem:[#allocation2 + $0x80] sm:$0xff] 0.0
        %263 = vst [vmem:[#allocation2 + $0x88] sm:$0xff] 0.0
        %264 = vst [vmem:[#allocation2 + $0x90] sm:$0xff] 0.0
        %265 = vst [vmem:[#allocation2 + $0x98] sm:$0xff] 0.0
        %266 = vst [vmem:[#allocation2 + $0xa0] sm:$0xff] 0.0
        %267 = vst [vmem:[#allocation2 + $0xa8] sm:$0xff] 0.0
        %268 = vst [vmem:[#allocation2 + $0xb0] sm:$0xff] 0.0
        %269 = vst [vmem:[#allocation2 + $0xb8] sm:$0xff] 0.0
        %270 = vst [vmem:[#allocation2 + $0xc0] sm:$0xff] 0.0
        %271 = vst [vmem:[#allocation2 + $0xc8] sm:$0xff] 0.0
        %272 = vst [vmem:[#allocation2 + $0xd0] sm:$0xff] 0.0
        %273 = vst [vmem:[#allocation2 + $0xd8] sm:$0xff] 0.0
        %274 = vst [vmem:[#allocation2 + $0xe0] sm:$0xff] 0.0
        %275 = vst [vmem:[#allocation2 + $0xe8] sm:$0xff] 0.0
        %276 = vst [vmem:[#allocation2 + $0xf0] sm:$0xff] 0.0
        %277 = vst [vmem:[#allocation2 + $0xf8] sm:$0xff] 0.0
      $region32: #{conv_forward.2} parent=27 // pred_fallthru
        _
      %s278 = smul.u32 %s21, 128
      %s279 = sshra.s32 %s278, 3
      %s280 = sand.u32 %s278, 7
      %s281 = smul.addr %s279, 4
      %s282 = scalar_lea.vmem %s1, %s281
      %v283 = vld [vmem:[%s282] sm:$0xf]
      %v284 = vld [vmem:[%s282 + $0x4] sm:$0xf]
      %v285 = vld [vmem:[%s282 + $0x8] sm:$0xf]
      %v286 = vld [vmem:[%s282 + $0xc] sm:$0xf]
      %v287 = vld [vmem:[%s282 + $0x10] sm:$0xf]
      %v288 = vld [vmem:[%s282 + $0x14] sm:$0xf]
      %v289 = vld [vmem:[%s282 + $0x18] sm:$0xf]
      %v290 = vld [vmem:[%s282 + $0x1c] sm:$0xf]
      %v291 = vld [vmem:[%s282 + $0x20] sm:$0xf]
      %v292 = vld [vmem:[%s282 + $0x24] sm:$0xf]
      %v293 = vld [vmem:[%s282 + $0x28] sm:$0xf]
      %v294 = vld [vmem:[%s282 + $0x2c] sm:$0xf]
      %v295 = vld [vmem:[%s282 + $0x30] sm:$0xf]
      %v296 = vld [vmem:[%s282 + $0x34] sm:$0xf]
      %v297 = vld [vmem:[%s282 + $0x38] sm:$0xf]
      %v298 = vld [vmem:[%s282 + $0x3c] sm:$0xf]
      %v299 = vld [vmem:[#allocation2] sm:$0xff]
      %v300 = vld [vmem:[#allocation2 + $0x8] sm:$0xff]
      %v301 = vld [vmem:[#allocation2 + $0x10] sm:$0xff]
      %v302 = vld [vmem:[#allocation2 + $0x18] sm:$0xff]
      %v303 = vld [vmem:[#allocation2 + $0x20] sm:$0xff]
      %v304 = vld [vmem:[#allocation2 + $0x28] sm:$0xff]
      %v305 = vld [vmem:[#allocation2 + $0x30] sm:$0xff]
      %v306 = vld [vmem:[#allocation2 + $0x38] sm:$0xff]
      %v307 = vld [vmem:[#allocation2 + $0x40] sm:$0xff]
      %v308 = vld [vmem:[#allocation2 + $0x48] sm:$0xff]
      %v309 = vld [vmem:[#allocation2 + $0x50] sm:$0xff]
      %v310 = vld [vmem:[#allocation2 + $0x58] sm:$0xff]
      %v311 = vld [vmem:[#allocation2 + $0x60] sm:$0xff]
      %v312 = vld [vmem:[#allocation2 + $0x68] sm:$0xff]
      %v313 = vld [vmem:[#allocation2 + $0x70] sm:$0xff]
      %v314 = vld [vmem:[#allocation2 + $0x78] sm:$0xff]
      %v315 = vld [vmem:[#allocation2 + $0x80] sm:$0xff]
      %v316 = vld [vmem:[#allocation2 + $0x88] sm:$0xff]
      %v317 = vld [vmem:[#allocation2 + $0x90] sm:$0xff]
      %v318 = vld [vmem:[#allocation2 + $0x98] sm:$0xff]
      %v319 = vld [vmem:[#allocation2 + $0xa0] sm:$0xff]
      %v320 = vld [vmem:[#allocation2 + $0xa8] sm:$0xff]
      %v321 = vld [vmem:[#allocation2 + $0xb0] sm:$0xff]
      %v322 = vld [vmem:[#allocation2 + $0xb8] sm:$0xff]
      %v323 = vld [vmem:[#allocation2 + $0xc0] sm:$0xff]
      %v324 = vld [vmem:[#allocation2 + $0xc8] sm:$0xff]
      %v325 = vld [vmem:[#allocation2 + $0xd0] sm:$0xff]
      %v326 = vld [vmem:[#allocation2 + $0xd8] sm:$0xff]
      %v327 = vld [vmem:[#allocation2 + $0xe0] sm:$0xff]
      %v328 = vld [vmem:[#allocation2 + $0xe8] sm:$0xff]
      %v329 = vld [vmem:[#allocation2 + $0xf0] sm:$0xff]
      %v330 = vld [vmem:[#allocation2 + $0xf8] sm:$0xff]
      %v331 = vld [vmem:[%s227] sm:$0xf]
      %v332 = vld [vmem:[%s227 + $0x4] sm:$0xf]
      %v333 = vld [vmem:[%s227 + $0x8] sm:$0xf]
      %v334 = vld [vmem:[%s227 + $0xc] sm:$0xf]
      %v335 = vld [vmem:[%s227 + $0x10] sm:$0xf]
      %v336 = vld [vmem:[%s227 + $0x14] sm:$0xf]
      %v337 = vld [vmem:[%s227 + $0x18] sm:$0xf]
      %v338 = vld [vmem:[%s227 + $0x1c] sm:$0xf]
      %v339 = vld [vmem:[%s227 + $0x20] sm:$0xf]
      %v340 = vld [vmem:[%s227 + $0x24] sm:$0xf]
      %v341 = vld [vmem:[%s227 + $0x28] sm:$0xf]
      %v342 = vld [vmem:[%s227 + $0x2c] sm:$0xf]
      %v343 = vld [vmem:[%s227 + $0x30] sm:$0xf]
      %v344 = vld [vmem:[%s227 + $0x34] sm:$0xf]
      %v345 = vld [vmem:[%s227 + $0x38] sm:$0xf]
      %v346 = vld [vmem:[%s227 + $0x3c] sm:$0xf]
      %v347 = vld [vmem:[%s227 + $0x40] sm:$0xf]
      %v348 = vld [vmem:[%s227 + $0x44] sm:$0xf]
      %v349 = vld [vmem:[%s227 + $0x48] sm:$0xf]
      %v350 = vld [vmem:[%s227 + $0x4c] sm:$0xf]
      %v351 = vld [vmem:[%s227 + $0x50] sm:$0xf]
      %v352 = vld [vmem:[%s227 + $0x54] sm:$0xf]
      %v353 = vld [vmem:[%s227 + $0x58] sm:$0xf]
      %v354 = vld [vmem:[%s227 + $0x5c] sm:$0xf]
      %v355 = vld [vmem:[%s227 + $0x60] sm:$0xf]
      %v356 = vld [vmem:[%s227 + $0x64] sm:$0xf]
      %v357 = vld [vmem:[%s227 + $0x68] sm:$0xf]
      %v358 = vld [vmem:[%s227 + $0x6c] sm:$0xf]
      %v359 = vld [vmem:[%s227 + $0x70] sm:$0xf]
      %v360 = vld [vmem:[%s227 + $0x74] sm:$0xf]
      %v361 = vld [vmem:[%s227 + $0x78] sm:$0xf]
      %v362 = vld [vmem:[%s227 + $0x7c] sm:$0xf]
      %v395 = vunpack.c.l.b16 %v331
      %v396 = vunpack.c.l.b16 %v332
      %v397 = vunpack.c.l.b16 %v333
      %v398 = vunpack.c.l.b16 %v334
      %v399 = vunpack.c.l.b16 %v335
      %v400 = vunpack.c.l.b16 %v336
      %v401 = vunpack.c.l.b16 %v337
      %v402 = vunpack.c.l.b16 %v338
      %v403 = vunpack.c.l.b16 %v339
      %v404 = vunpack.c.l.b16 %v340
      %v405 = vunpack.c.l.b16 %v341
      %v406 = vunpack.c.l.b16 %v342
      %v407 = vunpack.c.l.b16 %v343
      %v408 = vunpack.c.l.b16 %v344
      %v409 = vunpack.c.l.b16 %v345
      %v410 = vunpack.c.l.b16 %v346
      %v411 = vunpack.c.l.b16 %v347
      %v412 = vunpack.c.l.b16 %v348
      %v413 = vunpack.c.l.b16 %v349
      %v414 = vunpack.c.l.b16 %v350
      %v415 = vunpack.c.l.b16 %v351
      %v416 = vunpack.c.l.b16 %v352
      %v417 = vunpack.c.l.b16 %v353
      %v418 = vunpack.c.l.b16 %v354
      %v419 = vunpack.c.l.b16 %v355
      %v420 = vunpack.c.l.b16 %v356
      %v421 = vunpack.c.l.b16 %v357
      %v422 = vunpack.c.l.b16 %v358
      %v423 = vunpack.c.l.b16 %v359
      %v424 = vunpack.c.l.b16 %v360
      %v425 = vunpack.c.l.b16 %v361
      %v426 = vunpack.c.l.b16 %v362
      %v427 = vpack.c.b16 %v396, %v395
      %v428 = vpack.c.b16 %v398, %v397
      %v429 = vpack.c.b16 %v400, %v399
      %v430 = vpack.c.b16 %v402, %v401
      %v431 = vpack.c.b16 %v404, %v403
      %v432 = vpack.c.b16 %v406, %v405
      %v433 = vpack.c.b16 %v408, %v407
      %v434 = vpack.c.b16 %v410, %v409
      %v435 = vpack.c.b16 %v412, %v411
      %v436 = vpack.c.b16 %v414, %v413
      %v437 = vpack.c.b16 %v416, %v415
      %v438 = vpack.c.b16 %v418, %v417
      %v439 = vpack.c.b16 %v420, %v419
      %v440 = vpack.c.b16 %v422, %v421
      %v441 = vpack.c.b16 %v424, %v423
      %v442 = vpack.c.b16 %v426, %v425
      %v475 = vunpack.c.l.b16 %v283
      %v476 = vunpack.c.l.b16 %v284
      %v477 = vunpack.c.l.b16 %v285
      %v478 = vunpack.c.l.b16 %v286
      %v479 = vunpack.c.l.b16 %v287
      %v480 = vunpack.c.l.b16 %v288
      %v481 = vunpack.c.l.b16 %v289
      %v482 = vunpack.c.l.b16 %v290
      %v483 = vunpack.c.l.b16 %v291
      %v484 = vunpack.c.l.b16 %v292
      %v485 = vunpack.c.l.b16 %v293
      %v486 = vunpack.c.l.b16 %v294
      %v487 = vunpack.c.l.b16 %v295
      %v488 = vunpack.c.l.b16 %v296
      %v489 = vunpack.c.l.b16 %v297
      %v490 = vunpack.c.l.b16 %v298
      %v491 = vpack.c.b16 %v476, %v475
      %v492 = vpack.c.b16 %v478, %v477
      %v493 = vpack.c.b16 %v480, %v479
      %v494 = vpack.c.b16 %v482, %v481
      %v495 = vpack.c.b16 %v484, %v483
      %v496 = vpack.c.b16 %v486, %v485
      %v497 = vpack.c.b16 %v488, %v487
      %v498 = vpack.c.b16 %v490, %v489
      %507 = vmatprep.subr.bf16.mxu0 0
      %508 = vmatpush1.bf16.msra.mxu0 %v491
      %509 = vmatprep.subr.bf16.mxu0 0
      %510 = vmatpush1.bf16.msra.mxu0 %v492
      %511 = vmatprep.subr.bf16.mxu0 0
      %512 = vmatpush1.bf16.msra.mxu0 %v493
      %513 = vmatprep.subr.bf16.mxu0 0
      %514 = vmatpush1.bf16.msra.mxu0 %v494
      %515 = vmatprep.subr.bf16.mxu0 0
      %516 = vmatpush1.bf16.msra.mxu0 %v495
      %517 = vmatprep.subr.bf16.mxu0 0
      %518 = vmatpush1.bf16.msra.mxu0 %v496
      %519 = vmatprep.subr.bf16.mxu0 0
      %520 = vmatpush1.bf16.msra.mxu0 %v497
      %521 = vmatprep.subr.bf16.mxu0 0
      %522 = vmatpush1.bf16.msra.mxu0 %v498
      %523 = vmatprep.subr.bf16.mxu0 0
      %524 = vmatpush1.bf16.msra.mxu0 0
      %525 = vmatprep.subr.bf16.mxu0 0
      %526 = vmatpush1.bf16.msra.mxu0 0
      %527 = vmatprep.subr.bf16.mxu0 0
      %528 = vmatpush1.bf16.msra.mxu0 0
      %529 = vmatprep.subr.bf16.mxu0 0
      %530 = vmatpush1.bf16.msra.mxu0 0
      %531 = vmatprep.subr.bf16.mxu0 0
      %532 = vmatpush1.bf16.msra.mxu0 0
      %533 = vmatprep.subr.bf16.mxu0 0
      %534 = vmatpush1.bf16.msra.mxu0 0
      %535 = vmatprep.subr.bf16.mxu0 0
      %536 = vmatpush1.bf16.msra.mxu0 0
      %537 = vmatprep.subr.bf16.mxu0 0
      %538 = vmatpush1.bf16.msra.mxu0 0
      %539 = vmatprep.mubr.bf16.mxu0 0
      %540 = vmatmul.mubr.bf16.gmra.mrb[0].mxu0 %v427
      %v541 = vpop.f32.mrb[0].mxu0
      %v542 = vadd.f32 0.0, %v541
      %v543 = vpop.f32.mrb[0].mxu0
      %v544 = vpop.f32.mrb[0].mxu0
      %v545 = vadd.f32 0.0, %v544
      %v546 = vpop.f32.mrb[0].mxu0
      %547 = vmatprep.mubr.bf16.mxu0 0
      %548 = vmatmul.mubr.bf16.gmra.mrb[0].mxu0 %v428
      %v549 = vpop.f32.mrb[0].mxu0
      %v550 = vadd.f32 0.0, %v549
      %v551 = vpop.f32.mrb[0].mxu0
      %v552 = vpop.f32.mrb[0].mxu0
      %v553 = vadd.f32 0.0, %v552
      %v554 = vpop.f32.mrb[0].mxu0
      %555 = vmatprep.mubr.bf16.mxu0 0
      %556 = vmatmul.mubr.bf16.gmra.mrb[0].mxu0 %v429
      %v557 = vpop.f32.mrb[0].mxu0
      %v558 = vadd.f32 0.0, %v557
      %v559 = vpop.f32.mrb[0].mxu0
      %v560 = vpop.f32.mrb[0].mxu0
      %v561 = vadd.f32 0.0, %v560
      %v562 = vpop.f32.mrb[0].mxu0
      %563 = vmatprep.mubr.bf16.mxu0 0
      %564 = vmatmul.mubr.bf16.gmra.mrb[0].mxu0 %v430
      %v565 = vpop.f32.mrb[0].mxu0
      %v566 = vadd.f32 0.0, %v565
      %v567 = vpop.f32.mrb[0].mxu0
      %v568 = vpop.f32.mrb[0].mxu0
      %v569 = vadd.f32 0.0, %v568
      %v570 = vpop.f32.mrb[0].mxu0
      %571 = vmatprep.mubr.bf16.mxu0 0
      %572 = vmatmul.mubr.bf16.gmra.mrb[0].mxu0 %v431
      %v573 = vpop.f32.mrb[0].mxu0
      %v574 = vadd.f32 0.0, %v573
      %v575 = vpop.f32.mrb[0].mxu0
      %v576 = vpop.f32.mrb[0].mxu0
      %v577 = vadd.f32 0.0, %v576
      %v578 = vpop.f32.mrb[0].mxu0
      %579 = vmatprep.mubr.bf16.mxu0 0
      %580 = vmatmul.mubr.bf16.gmra.mrb[0].mxu0 %v432
      %v581 = vpop.f32.mrb[0].mxu0
      %v582 = vadd.f32 0.0, %v581
      %v583 = vpop.f32.mrb[0].mxu0
      %v584 = vpop.f32.mrb[0].mxu0
      %v585 = vadd.f32 0.0, %v584
      %v586 = vpop.f32.mrb[0].mxu0
      %587 = vmatprep.mubr.bf16.mxu0 0
      %588 = vmatmul.mubr.bf16.gmra.mrb[0].mxu0 %v433
      %v589 = vpop.f32.mrb[0].mxu0
      %v590 = vadd.f32 0.0, %v589
      %v591 = vpop.f32.mrb[0].mxu0
      %v592 = vpop.f32.mrb[0].mxu0
      %v593 = vadd.f32 0.0, %v592
      %v594 = vpop.f32.mrb[0].mxu0
      %595 = vmatprep.mubr.bf16.mxu0 0
      %596 = vmatmul.mubr.bf16.gmra.mrb[0].mxu0 %v434
      %v597 = vpop.f32.mrb[0].mxu0
      %v598 = vadd.f32 0.0, %v597
      %v599 = vpop.f32.mrb[0].mxu0
      %v600 = vpop.f32.mrb[0].mxu0
      %v601 = vadd.f32 0.0, %v600
      %v602 = vpop.f32.mrb[0].mxu0
      %603 = vmatprep.mubr.bf16.mxu0 0
      %604 = vmatmul.mubr.bf16.gmra.mrb[0].mxu0 %v435
      %v605 = vpop.f32.mrb[0].mxu0
      %v606 = vadd.f32 0.0, %v605
      %v607 = vpop.f32.mrb[0].mxu0
      %v608 = vpop.f32.mrb[0].mxu0
      %v609 = vadd.f32 0.0, %v608
      %v610 = vpop.f32.mrb[0].mxu0
      %611 = vmatprep.mubr.bf16.mxu0 0
      %612 = vmatmul.mubr.bf16.gmra.mrb[0].mxu0 %v436
      %v613 = vpop.f32.mrb[0].mxu0
      %v614 = vadd.f32 0.0, %v613
      %v615 = vpop.f32.mrb[0].mxu0
      %v616 = vpop.f32.mrb[0].mxu0
      %v617 = vadd.f32 0.0, %v616
      %v618 = vpop.f32.mrb[0].mxu0
      %619 = vmatprep.mubr.bf16.mxu0 0
      %620 = vmatmul.mubr.bf16.gmra.mrb[0].mxu0 %v437
      %v621 = vpop.f32.mrb[0].mxu0
      %v622 = vadd.f32 0.0, %v621
      %v623 = vpop.f32.mrb[0].mxu0
      %v624 = vpop.f32.mrb[0].mxu0
      %v625 = vadd.f32 0.0, %v624
      %v626 = vpop.f32.mrb[0].mxu0
      %627 = vmatprep.mubr.bf16.mxu0 0
      %628 = vmatmul.mubr.bf16.gmra.mrb[0].mxu0 %v438
      %v629 = vpop.f32.mrb[0].mxu0
      %v630 = vadd.f32 0.0, %v629
      %v631 = vpop.f32.mrb[0].mxu0
      %v632 = vpop.f32.mrb[0].mxu0
      %v633 = vadd.f32 0.0, %v632
      %v634 = vpop.f32.mrb[0].mxu0
      %635 = vmatprep.mubr.bf16.mxu0 0
      %636 = vmatmul.mubr.bf16.gmra.mrb[0].mxu0 %v439
      %v637 = vpop.f32.mrb[0].mxu0
      %v638 = vadd.f32 0.0, %v637
      %v639 = vpop.f32.mrb[0].mxu0
      %v640 = vpop.f32.mrb[0].mxu0
      %v641 = vadd.f32 0.0, %v640
      %v642 = vpop.f32.mrb[0].mxu0
      %643 = vmatprep.mubr.bf16.mxu0 0
      %644 = vmatmul.mubr.bf16.gmra.mrb[0].mxu0 %v440
      %v645 = vpop.f32.mrb[0].mxu0
      %v646 = vadd.f32 0.0, %v645
      %v647 = vpop.f32.mrb[0].mxu0
      %v648 = vpop.f32.mrb[0].mxu0
      %v649 = vadd.f32 0.0, %v648
      %v650 = vpop.f32.mrb[0].mxu0
      %651 = vmatprep.mubr.bf16.mxu0 0
      %652 = vmatmul.mubr.bf16.gmra.mrb[0].mxu0 %v441
      %v653 = vpop.f32.mrb[0].mxu0
      %v654 = vadd.f32 0.0, %v653
      %v655 = vpop.f32.mrb[0].mxu0
      %v656 = vpop.f32.mrb[0].mxu0
      %v657 = vadd.f32 0.0, %v656
      %v658 = vpop.f32.mrb[0].mxu0
      %659 = vmatprep.mubr.bf16.mxu0 0
      %660 = vmatmul.mubr.bf16.gmra.mrb[0].mxu0 %v442
      %v661 = vpop.f32.mrb[0].mxu0
      %v662 = vadd.f32 0.0, %v661
      %v663 = vpop.f32.mrb[0].mxu0
      %v664 = vpop.f32.mrb[0].mxu0
      %v665 = vadd.f32 0.0, %v664
      %v666 = vpop.f32.mrb[0].mxu0
      %667 = vdwg.mxu0
      %v668 = vadd.f32 %v299, %v542
      %v669 = vadd.f32 %v300, %v545
      %v670 = vadd.f32 %v301, %v550
      %v671 = vadd.f32 %v302, %v553
      %v672 = vadd.f32 %v303, %v558
      %v673 = vadd.f32 %v304, %v561
      %v674 = vadd.f32 %v305, %v566
      %v675 = vadd.f32 %v306, %v569
      %v676 = vadd.f32 %v307, %v574
      %v677 = vadd.f32 %v308, %v577
      %v678 = vadd.f32 %v309, %v582
      %v679 = vadd.f32 %v310, %v585
      %v680 = vadd.f32 %v311, %v590
      %v681 = vadd.f32 %v312, %v593
      %v682 = vadd.f32 %v313, %v598
      %v683 = vadd.f32 %v314, %v601
      %v684 = vadd.f32 %v315, %v606
      %v685 = vadd.f32 %v316, %v609
      %v686 = vadd.f32 %v317, %v614
      %v687 = vadd.f32 %v318, %v617
      %v688 = vadd.f32 %v319, %v622
      %v689 = vadd.f32 %v320, %v625
      %v690 = vadd.f32 %v321, %v630
      %v691 = vadd.f32 %v322, %v633
      %v692 = vadd.f32 %v323, %v638
      %v693 = vadd.f32 %v324, %v641
      %v694 = vadd.f32 %v325, %v646
      %v695 = vadd.f32 %v326, %v649
      %v696 = vadd.f32 %v327, %v654
      %v697 = vadd.f32 %v328, %v657
      %v698 = vadd.f32 %v329, %v662
      %v699 = vadd.f32 %v330, %v665
      %700 = vst [vmem:[#allocation2] sm:$0xff] %v668
      %701 = vst [vmem:[#allocation2 + $0x8] sm:$0xff] %v669
      %702 = vst [vmem:[#allocation2 + $0x10] sm:$0xff] %v670
      %703 = vst [vmem:[#allocation2 + $0x18] sm:$0xff] %v671
      %704 = vst [vmem:[#allocation2 + $0x20] sm:$0xff] %v672
      %705 = vst [vmem:[#allocation2 + $0x28] sm:$0xff] %v673
      %706 = vst [vmem:[#allocation2 + $0x30] sm:$0xff] %v674
      %707 = vst [vmem:[#allocation2 + $0x38] sm:$0xff] %v675
      %708 = vst [vmem:[#allocation2 + $0x40] sm:$0xff] %v676
      %709 = vst [vmem:[#allocation2 + $0x48] sm:$0xff] %v677
      %710 = vst [vmem:[#allocation2 + $0x50] sm:$0xff] %v678
      %711 = vst [vmem:[#allocation2 + $0x58] sm:$0xff] %v679
      %712 = vst [vmem:[#allocation2 + $0x60] sm:$0xff] %v680
      %713 = vst [vmem:[#allocation2 + $0x68] sm:$0xff] %v681
      %714 = vst [vmem:[#allocation2 + $0x70] sm:$0xff] %v682
      %715 = vst [vmem:[#allocation2 + $0x78] sm:$0xff] %v683
      %716 = vst [vmem:[#allocation2 + $0x80] sm:$0xff] %v684
      %717 = vst [vmem:[#allocation2 + $0x88] sm:$0xff] %v685
      %718 = vst [vmem:[#allocation2 + $0x90] sm:$0xff] %v686
      %719 = vst [vmem:[#allocation2 + $0x98] sm:$0xff] %v687
      %720 = vst [vmem:[#allocation2 + $0xa0] sm:$0xff] %v688
      %721 = vst [vmem:[#allocation2 + $0xa8] sm:$0xff] %v689
      %722 = vst [vmem:[#allocation2 + $0xb0] sm:$0xff] %v690
      %723 = vst [vmem:[#allocation2 + $0xb8] sm:$0xff] %v691
      %724 = vst [vmem:[#allocation2 + $0xc0] sm:$0xff] %v692
      %725 = vst [vmem:[#allocation2 + $0xc8] sm:$0xff] %v693
      %726 = vst [vmem:[#allocation2 + $0xd0] sm:$0xff] %v694
      %727 = vst [vmem:[#allocation2 + $0xd8] sm:$0xff] %v695
      %728 = vst [vmem:[#allocation2 + $0xe0] sm:$0xff] %v696
      %729 = vst [vmem:[#allocation2 + $0xe8] sm:$0xff] %v697
      %730 = vst [vmem:[#allocation2 + $0xf0] sm:$0xff] %v698
      %731 = vst [vmem:[#allocation2 + $0xf8] sm:$0xff] %v699
      // Predicated region
      $region33: #{conv_forward.2} parent=27 // pred_check
        %p732 = pneg %p242
      $region34: #{conv_forward.2} parent=27 // pred_check_branch
        %734 = sbr.rel (%p732) target = $region36
      $region35: #{conv_forward.2} parent=27 // pred_region
        %v735 = vld [vmem:[#allocation2] sm:$0xff]
        %v736 = vld [vmem:[#allocation2 + $0x8] sm:$0xff]
        %v737 = vld [vmem:[#allocation2 + $0x10] sm:$0xff]
        %v738 = vld [vmem:[#allocation2 + $0x18] sm:$0xff]
        %v739 = vld [vmem:[#allocation2 + $0x20] sm:$0xff]
        %v740 = vld [vmem:[#allocation2 + $0x28] sm:$0xff]
        %v741 = vld [vmem:[#allocation2 + $0x30] sm:$0xff]
        %v742 = vld [vmem:[#allocation2 + $0x38] sm:$0xff]
        %v743 = vld [vmem:[#allocation2 + $0x40] sm:$0xff]
        %v744 = vld [vmem:[#allocation2 + $0x48] sm:$0xff]
        %v745 = vld [vmem:[#allocation2 + $0x50] sm:$0xff]
        %v746 = vld [vmem:[#allocation2 + $0x58] sm:$0xff]
        %v747 = vld [vmem:[#allocation2 + $0x60] sm:$0xff]
        %v748 = vld [vmem:[#allocation2 + $0x68] sm:$0xff]
        %v749 = vld [vmem:[#allocation2 + $0x70] sm:$0xff]
        %v750 = vld [vmem:[#allocation2 + $0x78] sm:$0xff]
        %v751 = vld [vmem:[#allocation2 + $0x80] sm:$0xff]
        %v752 = vld [vmem:[#allocation2 + $0x88] sm:$0xff]
        %v753 = vld [vmem:[#allocation2 + $0x90] sm:$0xff]
        %v754 = vld [vmem:[#allocation2 + $0x98] sm:$0xff]
        %v755 = vld [vmem:[#allocation2 + $0xa0] sm:$0xff]
        %v756 = vld [vmem:[#allocation2 + $0xa8] sm:$0xff]
        %v757 = vld [vmem:[#allocation2 + $0xb0] sm:$0xff]
        %v758 = vld [vmem:[#allocation2 + $0xb8] sm:$0xff]
        %v759 = vld [vmem:[#allocation2 + $0xc0] sm:$0xff]
        %v760 = vld [vmem:[#allocation2 + $0xc8] sm:$0xff]
        %v761 = vld [vmem:[#allocation2 + $0xd0] sm:$0xff]
        %v762 = vld [vmem:[#allocation2 + $0xd8] sm:$0xff]
        %v763 = vld [vmem:[#allocation2 + $0xe0] sm:$0xff]
        %v764 = vld [vmem:[#allocation2 + $0xe8] sm:$0xff]
        %v765 = vld [vmem:[#allocation2 + $0xf0] sm:$0xff]
        %v766 = vld [vmem:[#allocation2 + $0xf8] sm:$0xff]
        %v767 = vpack.c.bf16 %v736, %v735
        %v768 = vpack.c.bf16 %v738, %v737
        %v769 = vpack.c.bf16 %v740, %v739
        %v770 = vpack.c.bf16 %v742, %v741
        %v771 = vpack.c.bf16 %v744, %v743
        %v772 = vpack.c.bf16 %v746, %v745
        %v773 = vpack.c.bf16 %v748, %v747
        %v774 = vpack.c.bf16 %v750, %v749
        %v775 = vpack.c.bf16 %v752, %v751
        %v776 = vpack.c.bf16 %v754, %v753
        %v777 = vpack.c.bf16 %v756, %v755
        %v778 = vpack.c.bf16 %v758, %v757
        %v779 = vpack.c.bf16 %v760, %v759
        %v780 = vpack.c.bf16 %v762, %v761
        %v781 = vpack.c.bf16 %v764, %v763
        %v782 = vpack.c.bf16 %v766, %v765
        %v799 = vunpack.c.l.b16 %v767
        %v800 = vunpack.c.h.b16 %v767
        %v801 = vunpack.c.l.b16 %v768
        %v802 = vunpack.c.h.b16 %v768
        %v803 = vunpack.c.l.b16 %v769
        %v804 = vunpack.c.h.b16 %v769
        %v805 = vunpack.c.l.b16 %v770
        %v806 = vunpack.c.h.b16 %v770
        %v807 = vunpack.c.l.b16 %v771
        %v808 = vunpack.c.h.b16 %v771
        %v809 = vunpack.c.l.b16 %v772
        %v810 = vunpack.c.h.b16 %v772
        %v811 = vunpack.c.l.b16 %v773
        %v812 = vunpack.c.h.b16 %v773
        %v813 = vunpack.c.l.b16 %v774
        %v814 = vunpack.c.h.b16 %v774
        %v815 = vunpack.c.l.b16 %v775
        %v816 = vunpack.c.h.b16 %v775
        %v817 = vunpack.c.l.b16 %v776
        %v818 = vunpack.c.h.b16 %v776
        %v819 = vunpack.c.l.b16 %v777
        %v820 = vunpack.c.h.b16 %v777
        %v821 = vunpack.c.l.b16 %v778
        %v822 = vunpack.c.h.b16 %v778
        %v823 = vunpack.c.l.b16 %v779
        %v824 = vunpack.c.h.b16 %v779
        %v825 = vunpack.c.l.b16 %v780
        %v826 = vunpack.c.h.b16 %v780
        %v827 = vunpack.c.l.b16 %v781
        %v828 = vunpack.c.h.b16 %v781
        %v829 = vunpack.c.l.b16 %v782
        %v830 = vunpack.c.h.b16 %v782
        %v831 = vpack.c.b16 %v799, %v799
        %v832 = vpack.c.b16 %v800, %v800
        %v833 = vpack.c.b16 %v801, %v801
        %v834 = vpack.c.b16 %v802, %v802
        %v835 = vpack.c.b16 %v803, %v803
        %v836 = vpack.c.b16 %v804, %v804
        %v837 = vpack.c.b16 %v805, %v805
        %v838 = vpack.c.b16 %v806, %v806
        %v839 = vpack.c.b16 %v807, %v807
        %v840 = vpack.c.b16 %v808, %v808
        %v841 = vpack.c.b16 %v809, %v809
        %v842 = vpack.c.b16 %v810, %v810
        %v843 = vpack.c.b16 %v811, %v811
        %v844 = vpack.c.b16 %v812, %v812
        %v845 = vpack.c.b16 %v813, %v813
        %v846 = vpack.c.b16 %v814, %v814
        %v847 = vpack.c.b16 %v815, %v815
        %v848 = vpack.c.b16 %v816, %v816
        %v849 = vpack.c.b16 %v817, %v817
        %v850 = vpack.c.b16 %v818, %v818
        %v851 = vpack.c.b16 %v819, %v819
        %v852 = vpack.c.b16 %v820, %v820
        %v853 = vpack.c.b16 %v821, %v821
        %v854 = vpack.c.b16 %v822, %v822
        %v855 = vpack.c.b16 %v823, %v823
        %v856 = vpack.c.b16 %v824, %v824
        %v857 = vpack.c.b16 %v825, %v825
        %v858 = vpack.c.b16 %v826, %v826
        %v859 = vpack.c.b16 %v827, %v827
        %v860 = vpack.c.b16 %v828, %v828
        %v861 = vpack.c.b16 %v829, %v829
        %v862 = vpack.c.b16 %v830, %v830
        %895 = vst [vmem:[%s233] sm:$0xf] %v831
        %896 = vst [vmem:[%s233 + $0x4] sm:$0xf] %v832
        %897 = vst [vmem:[%s233 + $0x8] sm:$0xf] %v833
        %898 = vst [vmem:[%s233 + $0xc] sm:$0xf] %v834
        %899 = vst [vmem:[%s233 + $0x10] sm:$0xf] %v835
        %900 = vst [vmem:[%s233 + $0x14] sm:$0xf] %v836
        %901 = vst [vmem:[%s233 + $0x18] sm:$0xf] %v837
        %902 = vst [vmem:[%s233 + $0x1c] sm:$0xf] %v838
        %903 = vst [vmem:[%s233 + $0x20] sm:$0xf] %v839
        %904 = vst [vmem:[%s233 + $0x24] sm:$0xf] %v840
        %905 = vst [vmem:[%s233 + $0x28] sm:$0xf] %v841
        %906 = vst [vmem:[%s233 + $0x2c] sm:$0xf] %v842
        %907 = vst [vmem:[%s233 + $0x30] sm:$0xf] %v843
        %908 = vst [vmem:[%s233 + $0x34] sm:$0xf] %v844
        %909 = vst [vmem:[%s233 + $0x38] sm:$0xf] %v845
        %910 = vst [vmem:[%s233 + $0x3c] sm:$0xf] %v846
        %911 = vst [vmem:[%s233 + $0x40] sm:$0xf] %v847
        %912 = vst [vmem:[%s233 + $0x44] sm:$0xf] %v848
        %913 = vst [vmem:[%s233 + $0x48] sm:$0xf] %v849
        %914 = vst [vmem:[%s233 + $0x4c] sm:$0xf] %v850
        %915 = vst [vmem:[%s233 + $0x50] sm:$0xf] %v851
        %916 = vst [vmem:[%s233 + $0x54] sm:$0xf] %v852
        %917 = vst [vmem:[%s233 + $0x58] sm:$0xf] %v853
        %918 = vst [vmem:[%s233 + $0x5c] sm:$0xf] %v854
        %919 = vst [vmem:[%s233 + $0x60] sm:$0xf] %v855
        %920 = vst [vmem:[%s233 + $0x64] sm:$0xf] %v856
        %921 = vst [vmem:[%s233 + $0x68] sm:$0xf] %v857
        %922 = vst [vmem:[%s233 + $0x6c] sm:$0xf] %v858
        %923 = vst [vmem:[%s233 + $0x70] sm:$0xf] %v859
        %924 = vst [vmem:[%s233 + $0x74] sm:$0xf] %v860
        %925 = vst [vmem:[%s233 + $0x78] sm:$0xf] %v861
        %926 = vst [vmem:[%s233 + $0x7c] sm:$0xf] %v862
        %v927 = vadd.f32 %v735, %v736
        %v928 = vadd.f32 %v927, %v737
        %v929 = vadd.f32 %v928, %v738
        %v930 = vadd.f32 %v929, %v739
        %v931 = vadd.f32 %v930, %v740
        %v932 = vadd.f32 %v931, %v741
        %v933 = vadd.f32 %v932, %v742
        %v934 = vadd.f32 %v933, %v743
        %v935 = vadd.f32 %v934, %v744
        %v936 = vadd.f32 %v935, %v745
        %v937 = vadd.f32 %v936, %v746
        %v938 = vadd.f32 %v937, %v747
        %v939 = vadd.f32 %v938, %v748
        %v940 = vadd.f32 %v939, %v749
        %v941 = vadd.f32 %v940, %v750
        %v942 = vadd.f32 %v941, %v751
        %v943 = vadd.f32 %v942, %v752
        %v944 = vadd.f32 %v943, %v753
        %v945 = vadd.f32 %v944, %v754
        %v946 = vadd.f32 %v945, %v755
        %v947 = vadd.f32 %v946, %v756
        %v948 = vadd.f32 %v947, %v757
        %v949 = vadd.f32 %v948, %v758
        %v950 = vadd.f32 %v949, %v759
        %v951 = vadd.f32 %v950, %v760
        %v952 = vadd.f32 %v951, %v761
        %v953 = vadd.f32 %v952, %v762
        %v954 = vadd.f32 %v953, %v763
        %v955 = vadd.f32 %v954, %v764
        %v956 = vadd.f32 %v955, %v765
        %v957 = vadd.f32 %v956, %v766
        %v958 = vrot.slane %v957, 4
        %v959 = vadd.f32 %v957, %v958
        %v960 = vrot.slane %v959, 2
        %v961 = vadd.f32 %v959, %v960
        %v962 = vrot.slane %v961, 1
        %v963 = vadd.f32 %v961, %v962
        %964 = vst [vmem:[%s237] sm:$0x1] %v963
        %v965 = vmul.f32 %v735, %v735
        %v966 = vmul.f32 %v736, %v736
        %v967 = vmul.f32 %v737, %v737
        %v968 = vmul.f32 %v738, %v738
        %v969 = vmul.f32 %v739, %v739
        %v970 = vmul.f32 %v740, %v740
        %v971 = vmul.f32 %v741, %v741
        %v972 = vmul.f32 %v742, %v742
        %v973 = vmul.f32 %v743, %v743
        %v974 = vmul.f32 %v744, %v744
        %v975 = vmul.f32 %v745, %v745
        %v976 = vmul.f32 %v746, %v746
        %v977 = vmul.f32 %v747, %v747
        %v978 = vmul.f32 %v748, %v748
        %v979 = vmul.f32 %v749, %v749
        %v980 = vmul.f32 %v750, %v750
        %v981 = vmul.f32 %v751, %v751
        %v982 = vmul.f32 %v752, %v752
        %v983 = vmul.f32 %v753, %v753
        %v984 = vmul.f32 %v754, %v754
        %v985 = vmul.f32 %v755, %v755
        %v986 = vmul.f32 %v756, %v756
        %v987 = vmul.f32 %v757, %v757
        %v988 = vmul.f32 %v758, %v758
        %v989 = vmul.f32 %v759, %v759
        %v990 = vmul.f32 %v760, %v760
        %v991 = vmul.f32 %v761, %v761
        %v992 = vmul.f32 %v762, %v762
        %v993 = vmul.f32 %v763, %v763
        %v994 = vmul.f32 %v764, %v764
        %v995 = vmul.f32 %v765, %v765
        %v996 = vmul.f32 %v766, %v766
        %v997 = vadd.f32 %v965, %v966
        %v998 = vadd.f32 %v997, %v967
        %v999 = vadd.f32 %v998, %v968
        %v1000 = vadd.f32 %v999, %v969
        %v1001 = vadd.f32 %v1000, %v970
        %v1002 = vadd.f32 %v1001, %v971
        %v1003 = vadd.f32 %v1002, %v972
        %v1004 = vadd.f32 %v1003, %v973
        %v1005 = vadd.f32 %v1004, %v974
        %v1006 = vadd.f32 %v1005, %v975
        %v1007 = vadd.f32 %v1006, %v976
        %v1008 = vadd.f32 %v1007, %v977
        %v1009 = vadd.f32 %v1008, %v978
        %v1010 = vadd.f32 %v1009, %v979
        %v1011 = vadd.f32 %v1010, %v980
        %v1012 = vadd.f32 %v1011, %v981
        %v1013 = vadd.f32 %v1012, %v982
        %v1014 = vadd.f32 %v1013, %v983
        %v1015 = vadd.f32 %v1014, %v984
        %v1016 = vadd.f32 %v1015, %v985
        %v1017 = vadd.f32 %v1016, %v986
        %v1018 = vadd.f32 %v1017, %v987
        %v1019 = vadd.f32 %v1018, %v988
        %v1020 = vadd.f32 %v1019, %v989
        %v1021 = vadd.f32 %v1020, %v990
        %v1022 = vadd.f32 %v1021, %v991
        %v1023 = vadd.f32 %v1022, %v992
        %v1024 = vadd.f32 %v1023, %v993
        %v1025 = vadd.f32 %v1024, %v994
        %v1026 = vadd.f32 %v1025, %v995
        %v1027 = vadd.f32 %v1026, %v996
        %v1028 = vrot.slane %v1027, 4
        %v1029 = vadd.f32 %v1027, %v1028
        %v1030 = vrot.slane %v1029, 2
        %v1031 = vadd.f32 %v1029, %v1030
        %v1032 = vrot.slane %v1031, 1
        %v1033 = vadd.f32 %v1031, %v1032
        %1034 = vst [vmem:[%s240] sm:$0x1] %v1033
      $region36: #{conv_forward.2} parent=27 // pred_fallthru
        _
      %s1035 = smul.u32 32, %s20
      %p1036 = scmp.lt.s32.totalorder %s1035, 63
      %s1037 = scalar_select %p1036, %s1035, 63
      %s1038 = smul.addr %s1037, 4
      %s1039 = scalar_lea.vmem %s2, %s1038
      %p1040 = scmp.lt.s32.totalorder %s20, 1
      %s1041 = scalar_select %p1040, %s20, 1
      %s1042 = scalar_lea.vmem %s3, %s1041
      %p1043 = scmp.lt.s32.totalorder %s20, 1
      %s1044 = scalar_select %p1043, %s20, 1
      %s1045 = scalar_lea.vmem %s4, %s1044
      // Predicated region
      $region37: #{conv_forward.2} parent=27 // pred_check
        %p1046 = pneg %p95
      $region38: #{conv_forward.2} parent=27 // pred_check_branch
        %1048 = sbr.rel (%p1046) target = $region40
      $region39: #{conv_forward.2} parent=27 // pred_region
        %s1049 = smul.u32 32, %s20
      $region40: #{conv_forward.2} parent=27 // pred_fallthru
        _
      // Predicated region
      $region41: #{conv_forward.2} parent=27 // pred_check
        %p1050 = pneg %p121
      $region42: #{conv_forward.2} parent=27 // pred_check_branch
        %1052 = sbr.rel (%p1050) target = $region44
      $region43: #{conv_forward.2} parent=27 // pred_region
        _
      $region44: #{conv_forward.2} parent=27 // pred_fallthru
        _
      // Predicated region
      $region45: #{conv_forward.2} parent=27 // pred_check
        %p1053 = pneg %p147
      $region46: #{conv_forward.2} parent=27 // pred_check_branch
        %1055 = sbr.rel (%p1053) target = $region48
      $region47: #{conv_forward.2} parent=27 // pred_region
        _
      $region48: #{conv_forward.2} parent=27 // pred_fallthru
        _
    $region28: #{conv_forward.2} parent=5 // pred_fallthru
      _
    %p1056 = scmp.le.s32.totalorder 2, %s11
    // Predicated region
    $region49: #{conv_forward.2} parent=5 // pred_check
      %p1057 = pneg %p1056
    $region50: #{conv_forward.2} parent=5 // pred_check_branch
      %1059 = sbr.rel (%p1057) target = $region52
    $region51: #{conv_forward.2} parent=5 // pred_region
      %s1060 = ssub.s32 %s11, 2
      // Predicated region
      $region53: #{conv_forward.2} parent=51 // pred_check
        %p1061 = pneg %p101
      $region54: #{conv_forward.2} parent=51 // pred_check_branch
        %1063 = sbr.rel (%p1061) target = $region56
      $region55: #{conv_forward.2} parent=51 // pred_region
        %s1064 = smul.u32 32, %s22
        %p1065 = scmp.lt.s32.totalorder %s1064, 63
        %s1066 = scalar_select %p1065, %s1064, 63
        %s1067 = smul.addr %s1066, 4
        %s1068 = scalar_lea.vmem %s2, %s1067
      $region56: #{conv_forward.2} parent=51 // pred_fallthru
        _
      // Predicated region
      $region57: #{conv_forward.2} parent=51 // pred_check
        %p1069 = pneg %p127
      $region58: #{conv_forward.2} parent=51 // pred_check_branch
        %1071 = sbr.rel (%p1069) target = $region60
      $region59: #{conv_forward.2} parent=51 // pred_region
        %p1072 = scmp.lt.s32.totalorder %s22, 1
        %s1073 = scalar_select %p1072, %s22, 1
        %s1074 = scalar_lea.vmem %s3, %s1073
      $region60: #{conv_forward.2} parent=51 // pred_fallthru
        _
      // Predicated region
      $region61: #{conv_forward.2} parent=51 // pred_check
        %p1075 = pneg %p153
      $region62: #{conv_forward.2} parent=51 // pred_check_branch
        %1077 = sbr.rel (%p1075) target = $region64
      $region63: #{conv_forward.2} parent=51 // pred_region
        %p1078 = scmp.lt.s32.totalorder %s22, 1
        %s1079 = scalar_select %p1078, %s22, 1
        %s1080 = scalar_lea.vmem %s4, %s1079
      $region64: #{conv_forward.2} parent=51 // pred_fallthru
        _
    $region52: #{conv_forward.2} parent=5 // pred_fallthru
      _
  $region6: #{conv_forward.2} parent=0 // loop_footer
    %s15 = sadd.s32 1, %s11
  $region7: #{conv_forward.2} parent=0 // loop_footer_branch
    %10 = sbr.rel target = $region3
  $region8: #{conv_forward.2} parent=0 // loop_exit
    _

</llo_original>
